<compile_context>
chip_gen: v6e
topology: v6e:2x2x1
jax: 0.10.0
libtpu: 0.0.40
codegen_flags: <defaults>
</compile_context>

<pallas_src>
import functools

import jax
import jax.numpy as jnp
from jax import lax
from jax.experimental import pallas as pl
from jax.experimental.pallas import tpu as pltpu


def _supcon_kernel(q_ref, kt_ref, lab_row_ref, lab_col_ref, out_ref,
                   m_sc, s_sc, num_sc, cnt_sc,
                   *, batch_size, block_b, block_k, pad_cols):
    i = pl.program_id(0)          # query-row tile  (parallel)
    k = pl.program_id(1)          # key tile        (arbitrary / streamed)
    nk = pl.num_programs(1)

    @pl.when(k == 0)
    def _init():
        m_sc[...] = jnp.full((block_b, 1), -jnp.inf, jnp.float32)
        s_sc[...] = jnp.zeros((block_b, 1), jnp.float32)
        num_sc[...] = jnp.zeros((block_b, 1), jnp.float32)
        cnt_sc[...] = jnp.zeros((block_b, 1), jnp.float32)

    lab_row = lab_row_ref[...]                       # [block_b, 1] int32
    lab_col = lab_col_ref[...]                       # [1, block_k] int32

    # Canonical [M,K]x[K,N] MXU matmul: queries are pre-scaled by 1/T and keys
    # are pre-transposed in the wrapper, so no per-step transpose or rescale.
    logits = jnp.dot(q_ref[...], kt_ref[...],
                     preferred_element_type=jnp.float32)   # [block_b, block_k]

    pos = lab_row == lab_col                          # positives (broadcasted)

    def update(mask_self):
        m_prev = m_sc[...]
        m_new = jnp.maximum(m_prev, jnp.max(logits, axis=1, keepdims=True))
        p = jnp.exp(logits - m_new)
        if mask_self:
            row_gid = i * block_b + lax.broadcasted_iota(
                jnp.int32, (block_b, 1), 0)
            col_gid = k * block_k + lax.broadcasted_iota(
                jnp.int32, (1, block_k), 1)
            not_self = row_gid != col_gid
            p = jnp.where(not_self, p, 0.0)
            pos_m = pos & not_self
        else:
            pos_m = pos
        # Online (streaming) masked log-sum-exp + positive-logit accumulation.
        s_sc[...] = (s_sc[...] * jnp.exp(m_prev - m_new)
                     + jnp.sum(p, axis=1, keepdims=True))
        num_sc[...] += jnp.sum(jnp.where(pos_m, logits, 0.0),
                               axis=1, keepdims=True)
        cnt_sc[...] += jnp.sum(pos_m.astype(jnp.float32), axis=1, keepdims=True)
        m_sc[...] = m_new

    # Self-similarity exclusion only matters on key tiles that intersect the
    # diagonal (at most one per row tile); every other step skips the extra
    # full-tile mask passes on the VPU.
    row_lo = i * block_b
    col_lo = k * block_k
    diag_hit = (col_lo < row_lo + block_b) & (row_lo < col_lo + block_k)

    @pl.when(diag_hit)
    def _diag_step():
        update(True)

    @pl.when(jnp.logical_not(diag_hit))
    def _off_diag_step():
        update(False)

    @pl.when(k == nk - 1)
    def _finalize():
        m = m_sc[...]
        s = s_sc[...]
        if pad_cols:
            # Padded key columns are exactly-zero vectors (logit == 0): remove
            # their exp-sum contribution once instead of masking every step.
            s = s - float(pad_cols) * jnp.exp(-m)
        num = num_sc[...]
        cnt = cnt_sc[...]
        # Fused log-softmax tail: sum_j mask*log_prob = num - cnt*(m + log s).
        # Exact divide (runs once per row tile).  Rows with cnt == 0 produce
        # NaN just like the PyTorch reference's 0/0.
        mlpp = (num - cnt * (m + jnp.log(s))) / cnt
        row_gid = i * block_b + lax.broadcasted_iota(jnp.int32, (block_b, 1), 0)
        out_ref[...] = jnp.where(row_gid < batch_size, mlpp, 0.0)


def _round_up(x, m):
    return ((x + m - 1) // m) * m


def targeted_supcon_no_weight_loss(q, labels, prototypes, prototypes_labels,
                                    temperature=0.07,
                                    matmul_dtype=jnp.bfloat16):
    """JAX/Pallas equivalent of TargetedSupConNoWeightLoss.forward."""
    B, D = q.shape
    P = prototypes.shape[0]
    N = B + P                                   # q-as-keys + prototypes
    inv_temp = 1.0 / float(temperature)
    op_bytes = jnp.dtype(matmul_dtype).itemsize

    D_pad = _round_up(D, 128)

    # --- tile sizes ---------------------------------------------------------
    # block_b = 256 feeds the 256x256 MXU (v6e/v7x) and halves key re-streaming,
    # but keep 128 for small batches so there are >= 2 row tiles for megacore.
    block_b = 256 if _round_up(B, 256) >= 512 else 128
    # Large key tiles; the key axis is padded up so block_k always divides
    # (padded columns are exact zeros and corrected analytically in-kernel).
    n128 = _round_up(N, 128)
    block_k = 512 if n128 > 512 else n128

    try:
        vmem_cap = int(pltpu.get_tpu_info().vmem_capacity_bytes)
    except Exception:
        vmem_cap = 64 << 20                     # conservative fallback
    vmem_budget = int(vmem_cap * 0.78)          # ~100 MiB v5e/v6e, ~50 MiB v7x

    def vmem_estimate(bb, bk):
        est = 2 * op_bytes * D_pad * (bb + bk)  # double-buffered matmul operands
        est += 2 * 4 * (bb + bk)                # label blocks
        est += 2 * 4 * bb                       # output block
        est += 4 * 4 * bb * 128                 # [bb,1] scratches (lane-padded)
        est += 8 * 4 * bb * bk                  # logits + elementwise temps
        return est

    if vmem_estimate(block_b, block_k) > vmem_budget:
        # Minimal lane-aligned tiling for very large feature dims.
        # TODO(synk): tile the feature dim D as well if even this overflows.
        block_b, block_k = 128, 128

    B_rowpad = _round_up(B, block_b)
    N_pad = _round_up(N, block_k)
    pad_cols = N_pad - N
    vmem_limit = int(vmem_budget)

    # --- padded, pre-scaled / pre-transposed operands -----------------------
    q32 = q.astype(jnp.float32)
    q_scaled = jnp.zeros((B_rowpad, D_pad), matmul_dtype)
    q_scaled = q_scaled.at[:B, :D].set((q32 * inv_temp).astype(matmul_dtype))

    keys = jnp.zeros((N_pad, D_pad), matmul_dtype)
    keys = keys.at[:B, :D].set(q.astype(matmul_dtype))
    keys = keys.at[B:N, :D].set(prototypes.astype(matmul_dtype))
    keys_t = keys.T                             # one-time transpose -> [D_pad, N_pad]

    labels_flat = labels.reshape(-1).astype(jnp.int32)
    proto_flat = prototypes_labels.reshape(-1).astype(jnp.int32)
    # Sentinel labels on padding (real class labels are >= 0) so padded
    # rows/columns can never register as positives.
    lab_row = jnp.full((B_rowpad, 1), -1, jnp.int32).at[:B, 0].set(labels_flat)
    lab_col = jnp.full((1, N_pad), -2, jnp.int32)
    lab_col = lab_col.at[0, :B].set(labels_flat).at[0, B:N].set(proto_flat)

    kernel = functools.partial(
        _supcon_kernel, batch_size=B, block_b=block_b, block_k=block_k,
        pad_cols=pad_cols)

    grid = (B_rowpad // block_b, N_pad // block_k)
    per_row = pl.pallas_call(
        kernel,
        out_shape=jax.ShapeDtypeStruct((B_rowpad, 1), jnp.float32),
        grid_spec=pltpu.PrefetchScalarGridSpec(
            num_scalar_prefetch=0,
            grid=grid,
            in_specs=[
                pl.BlockSpec((block_b, D_pad), lambda i, k: (i, 0)),  # q / T
                pl.BlockSpec((D_pad, block_k), lambda i, k: (0, k)),  # keys^T
                pl.BlockSpec((block_b, 1), lambda i, k: (i, 0)),      # row labels
                pl.BlockSpec((1, block_k), lambda i, k: (0, k)),      # key labels
            ],
            out_specs=pl.BlockSpec((block_b, 1), lambda i, k: (i, 0)),
            scratch_shapes=[pltpu.VMEM((block_b, 1), jnp.float32)] * 4,
        ),
        compiler_params=pltpu.CompilerParams(
            dimension_semantics=("parallel", "arbitrary"),
            vmem_limit_bytes=vmem_limit),
    )(q_scaled, keys_t, lab_row, lab_col)

    # Padded rows carry 0; mean + negate over the real batch rows only.
    return -jnp.mean(per_row[:B, 0])


def _reference_loss(q, labels, prototypes, prototypes_labels, temperature=0.07):
    """Pure-JAX reference mirroring the PyTorch module."""
    B = labels.shape[0]
    targets = labels.reshape(-1, 1)
    targets = jnp.concatenate([targets, prototypes_labels.reshape(-1, 1)], axis=0)
    mask = (targets[:B] == targets.T).astype(jnp.float32)
    logits_mask = jnp.ones_like(mask).at[jnp.arange(B), jnp.arange(B)].set(0.0)
    mask = mask * logits_mask
    q_all = jnp.concatenate([q, prototypes], axis=0)
    logits = (q_all[:B] @ q_all.T) / temperature
    logits = logits - jnp.max(logits, axis=1, keepdims=True)
    exp_logits = jnp.exp(logits) * logits_mask
    log_prob = logits - jnp.log(jnp.sum(exp_logits, axis=1, keepdims=True))
    mean_log_prob_pos = jnp.sum(mask * log_prob, axis=1) / jnp.sum(mask, axis=1)
    return -jnp.mean(mean_log_prob_pos)


if __name__ == "__main__":
    key = jax.random.PRNGKey(0)
    B, D, C = 8, 32, 5   # batch, feature dim, num_classes (= num prototypes)

    k1, k2, k3 = jax.random.split(key, 3)
    q = jax.random.normal(k1, (B, D), dtype=jnp.float32)
    q = q / jnp.linalg.norm(q, axis=1, keepdims=True)
    prototypes = jax.random.normal(k2, (C, D), dtype=jnp.float32)
    prototypes = prototypes / jnp.linalg.norm(prototypes, axis=1, keepdims=True)
    labels = jax.random.randint(k3, (B,), 0, C, dtype=jnp.int32)
    prototypes_labels = jnp.arange(C, dtype=jnp.int32).reshape(C, 1)

    ref = _reference_loss(q, labels, prototypes, prototypes_labels)

    # Default path: bf16 MXU operands, f32 accumulation / softmax math.
    loss_bf16 = targeted_supcon_no_weight_loss(q, labels, prototypes,
                                               prototypes_labels)
    jax.block_until_ready(loss_bf16)
    assert jnp.allclose(loss_bf16, ref, rtol=2e-2, atol=2e-2), (loss_bf16, ref)

    # f32 MXU path for tight agreement with the f32 reference.
    loss_f32 = targeted_supcon_no_weight_loss(q, labels, prototypes,
                                              prototypes_labels,
                                              matmul_dtype=jnp.float32)
    jax.block_until_ready(loss_f32)
    assert jnp.allclose(loss_f32, ref, rtol=2e-3, atol=2e-3), (loss_f32, ref)

    print("KERNEL_OK")
</pallas_src>

<mosaic_0001>
module attributes {stable_mosaic.version = 11 : i64} {
  func.func @_supcon_kernel(%arg0: i32, %arg1: i32, %arg2: memref<128x128xbf16, #tpu.memory_space<vmem>>, %arg3: memref<128x128xbf16, #tpu.memory_space<vmem>>, %arg4: memref<128x1xi32, #tpu.memory_space<vmem>>, %arg5: memref<1x128xi32, #tpu.memory_space<vmem>>, %arg6: memref<128x1xf32, #tpu.memory_space<vmem>>, %arg7: memref<128x1xf32, #tpu.memory_space<vmem>>, %arg8: memref<128x1xf32, #tpu.memory_space<vmem>>, %arg9: memref<128x1xf32, #tpu.memory_space<vmem>>, %arg10: memref<128x1xf32, #tpu.memory_space<vmem>>) attributes {dimension_semantics = [#tpu.dimension_semantics<parallel>, #tpu.dimension_semantics<arbitrary>], iteration_bounds = array<i64: 1, 1>, scalar_prefetch = 0 : i64, scratch_operands = 4 : i64, tpu.core_type = #tpu.core_type<tc>, window_params = [{transform_indices = @transform_0, window_bounds = array<i64: 128, 128>}, {transform_indices = @transform_1, window_bounds = array<i64: 128, 128>}, {transform_indices = @transform_2, window_bounds = array<i64: 128, 1>}, {transform_indices = @transform_3, window_bounds = array<i64: 1, 128>}, {transform_indices = @transform_4, window_bounds = array<i64: 128, 1>}]} {
    %c0_i32 = arith.constant 0 : i32
    %0 = arith.cmpi eq, %arg1, %c0_i32 : i32
    %1 = arith.extui %0 : i1 to i32
    %c0_i32_0 = arith.constant 0 : i32
    %2 = arith.cmpi ne, %1, %c0_i32_0 : i32
    scf.if %2 {
      %cst_15 = arith.constant 0xFF800000 : f32
      %26 = vector.broadcast %cst_15 : f32 to vector<128x1xf32>
      %c0_16 = arith.constant 0 : index
      %c0_17 = arith.constant 0 : index
      %27 = vector.load %arg7[%c0_16, %c0_17] : memref<128x1xf32, #tpu.memory_space<vmem>>, vector<128x1xf32>
      tpu.vector_store %arg7[%c0_16, %c0_17], %26 {strides = array<i32>} : memref<128x1xf32, #tpu.memory_space<vmem>>, vector<128x1xf32>,
      %cst_18 = arith.constant 0.000000e+00 : f32
      %28 = vector.broadcast %cst_18 : f32 to vector<128x1xf32>
      %c0_19 = arith.constant 0 : index
      %c0_20 = arith.constant 0 : index
      %29 = vector.load %arg8[%c0_19, %c0_20] : memref<128x1xf32, #tpu.memory_space<vmem>>, vector<128x1xf32>
      tpu.vector_store %arg8[%c0_19, %c0_20], %28 {strides = array<i32>} : memref<128x1xf32, #tpu.memory_space<vmem>>, vector<128x1xf32>,
      %cst_21 = arith.constant 0.000000e+00 : f32
      %30 = vector.broadcast %cst_21 : f32 to vector<128x1xf32>
      %c0_22 = arith.constant 0 : index
      %c0_23 = arith.constant 0 : index
      %31 = vector.load %arg9[%c0_22, %c0_23] : memref<128x1xf32, #tpu.memory_space<vmem>>, vector<128x1xf32>
      tpu.vector_store %arg9[%c0_22, %c0_23], %30 {strides = array<i32>} : memref<128x1xf32, #tpu.memory_space<vmem>>, vector<128x1xf32>,
      %cst_24 = arith.constant 0.000000e+00 : f32
      %32 = vector.broadcast %cst_24 : f32 to vector<128x1xf32>
      %c0_25 = arith.constant 0 : index
      %c0_26 = arith.constant 0 : index
      %33 = vector.load %arg10[%c0_25, %c0_26] : memref<128x1xf32, #tpu.memory_space<vmem>>, vector<128x1xf32>
      tpu.vector_store %arg10[%c0_25, %c0_26], %32 {strides = array<i32>} : memref<128x1xf32, #tpu.memory_space<vmem>>, vector<128x1xf32>,
    } else {
    }
    %c0 = arith.constant 0 : index
    %c0_1 = arith.constant 0 : index
    %3 = vector.load %arg4[%c0, %c0_1] : memref<128x1xi32, #tpu.memory_space<vmem>>, vector<128x1xi32>
    %c0_2 = arith.constant 0 : index
    %c0_3 = arith.constant 0 : index
    %4 = vector.load %arg5[%c0_2, %c0_3] : memref<1x128xi32, #tpu.memory_space<vmem>>, vector<1x128xi32>
    %c0_4 = arith.constant 0 : index
    %c0_5 = arith.constant 0 : index
    %5 = vector.load %arg2[%c0_4, %c0_5] : memref<128x128xbf16, #tpu.memory_space<vmem>>, vector<128x128xbf16>
    %c0_6 = arith.constant 0 : index
    %c0_7 = arith.constant 0 : index
    %6 = vector.load %arg3[%c0_6, %c0_7] : memref<128x128xbf16, #tpu.memory_space<vmem>>, vector<128x128xbf16>
    %cst = arith.constant dense<0.000000e+00> : vector<128x128xf32>
    %7 = tpu.matmul %5, %6, %cst {dimension_numbers = #tpu.dot_dimension_numbers<[1], [0], [0], [1], [0, 0, 1, 1], [], []>} : vector<128x128xbf16>, vector<128x128xbf16>, vector<128x128xf32> -> vector<128x128xf32>
    %8 = vector.broadcast %3 : vector<128x1xi32> to vector<128x128xi32>
    %9 = vector.broadcast %4 : vector<1x128xi32> to vector<128x128xi32>
    %10 = arith.cmpi eq, %8, %9 : vector<128x128xi32>
    %c128_i32 = arith.constant 128 : i32
    %11 = arith.muli %arg0, %c128_i32 : i32
    %c128_i32_8 = arith.constant 128 : i32
    %12 = arith.muli %arg1, %c128_i32_8 : i32
    %c128_i32_9 = arith.constant 128 : i32
    %13 = arith.addi %11, %c128_i32_9 : i32
    %14 = arith.cmpi slt, %12, %13 : i32
    %c128_i32_10 = arith.constant 128 : i32
    %15 = arith.addi %12, %c128_i32_10 : i32
    %16 = arith.cmpi slt, %11, %15 : i32
    %17 = arith.andi %14, %16 : i1
    %18 = arith.extui %17 : i1 to i32
    %c0_i32_11 = arith.constant 0 : i32
    %19 = arith.cmpi ne, %18, %c0_i32_11 : i32
    scf.if %19 {
      %c0_15 = arith.constant 0 : index
      %c0_16 = arith.constant 0 : index
      %26 = vector.load %arg7[%c0_15, %c0_16] : memref<128x1xf32, #tpu.memory_space<vmem>>, vector<128x1xf32>
      %cst_17 = arith.constant dense<0xFF800000> : vector<128xf32>
      %27 = vector.multi_reduction <maximumf>, %7, %cst_17 [1] : vector<128x128xf32> to vector<128xf32>
      %28 = vector.shape_cast %27 : vector<128xf32> to vector<128x1xf32>
      %29 = arith.maximumf %26, %28 : vector<128x1xf32>
      %30 = vector.broadcast %29 : vector<128x1xf32> to vector<128x128xf32>
      %31 = arith.subf %7, %30 : vector<128x128xf32>
      %32 = math.exp %31 : vector<128x128xf32>
      %c128_i32_18 = arith.constant 128 : i32
      %33 = arith.muli %arg0, %c128_i32_18 : i32
      %34 = tpu.iota {dimensions = array<i32: 0>} : vector<128x1xi32>
      %35 = vector.broadcast %33 : i32 to vector<128x1xi32>
      %36 = arith.addi %35, %34 : vector<128x1xi32>
      %c128_i32_19 = arith.constant 128 : i32
      %37 = arith.muli %arg1, %c128_i32_19 : i32
      %38 = tpu.iota {dimensions = array<i32: 1>} : vector<1x128xi32>
      %39 = vector.broadcast %37 : i32 to vector<1x128xi32>
      %40 = arith.addi %39, %38 : vector<1x128xi32>
      %41 = vector.broadcast %36 : vector<128x1xi32> to vector<128x128xi32>
      %42 = vector.broadcast %40 : vector<1x128xi32> to vector<128x128xi32>
      %43 = arith.cmpi ne, %41, %42 : vector<128x128xi32>
      %cst_20 = arith.constant 0.000000e+00 : f32
      %44 = vector.broadcast %cst_20 : f32 to vector<128x128xf32>
      %45 = arith.select %43, %32, %44 : vector<128x128xi1>, vector<128x128xf32>
      %46 = arith.andi %10, %43 : vector<128x128xi1>
      %c0_21 = arith.constant 0 : index
      %c0_22 = arith.constant 0 : index
      %47 = vector.load %arg8[%c0_21, %c0_22] : memref<128x1xf32, #tpu.memory_space<vmem>>, vector<128x1xf32>
      %48 = arith.subf %26, %29 : vector<128x1xf32>
      %49 = math.exp %48 : vector<128x1xf32>
      %50 = arith.mulf %47, %49 : vector<128x1xf32>
      %cst_23 = arith.constant dense<0.000000e+00> : vector<128xf32>
      %51 = vector.multi_reduction <add>, %45, %cst_23 [1] : vector<128x128xf32> to vector<128xf32>
      %52 = vector.shape_cast %51 : vector<128xf32> to vector<128x1xf32>
      %53 = arith.addf %50, %52 : vector<128x1xf32>
      %c0_24 = arith.constant 0 : index
      %c0_25 = arith.constant 0 : index
      %54 = vector.load %arg8[%c0_24, %c0_25] : memref<128x1xf32, #tpu.memory_space<vmem>>, vector<128x1xf32>
      tpu.vector_store %arg8[%c0_24, %c0_25], %53 {strides = array<i32>} : memref<128x1xf32, #tpu.memory_space<vmem>>, vector<128x1xf32>,
      %c0_26 = arith.constant 0 : index
      %c0_27 = arith.constant 0 : index
      %55 = vector.load %arg9[%c0_26, %c0_27] : memref<128x1xf32, #tpu.memory_space<vmem>>, vector<128x1xf32>
      %cst_28 = arith.constant 0.000000e+00 : f32
      %56 = vector.broadcast %cst_28 : f32 to vector<128x128xf32>
      %57 = arith.select %46, %7, %56 : vector<128x128xi1>, vector<128x128xf32>
      %cst_29 = arith.constant dense<0.000000e+00> : vector<128xf32>
      %58 = vector.multi_reduction <add>, %57, %cst_29 [1] : vector<128x128xf32> to vector<128xf32>
      %59 = vector.shape_cast %58 : vector<128xf32> to vector<128x1xf32>
      %60 = arith.addf %55, %59 : vector<128x1xf32>
      %c0_30 = arith.constant 0 : index
      %c0_31 = arith.constant 0 : index
      %61 = vector.load %arg9[%c0_30, %c0_31] : memref<128x1xf32, #tpu.memory_space<vmem>>, vector<128x1xf32>
      tpu.vector_store %arg9[%c0_30, %c0_31], %60 {strides = array<i32>} : memref<128x1xf32, #tpu.memory_space<vmem>>, vector<128x1xf32>,
      %c0_32 = arith.constant 0 : index
      %c0_33 = arith.constant 0 : index
      %62 = vector.load %arg10[%c0_32, %c0_33] : memref<128x1xf32, #tpu.memory_space<vmem>>, vector<128x1xf32>
      %63 = arith.extui %46 : vector<128x128xi1> to vector<128x128xi32>
      %64 = arith.sitofp %63 : vector<128x128xi32> to vector<128x128xf32>
      %cst_34 = arith.constant dense<0.000000e+00> : vector<128xf32>
      %65 = vector.multi_reduction <add>, %64, %cst_34 [1] : vector<128x128xf32> to vector<128xf32>
      %66 = vector.shape_cast %65 : vector<128xf32> to vector<128x1xf32>
      %67 = arith.addf %62, %66 : vector<128x1xf32>
      %c0_35 = arith.constant 0 : index
      %c0_36 = arith.constant 0 : index
      %68 = vector.load %arg10[%c0_35, %c0_36] : memref<128x1xf32, #tpu.memory_space<vmem>>, vector<128x1xf32>
      tpu.vector_store %arg10[%c0_35, %c0_36], %67 {strides = array<i32>} : memref<128x1xf32, #tpu.memory_space<vmem>>, vector<128x1xf32>,
      %c0_37 = arith.constant 0 : index
      %c0_38 = arith.constant 0 : index
      %69 = vector.load %arg7[%c0_37, %c0_38] : memref<128x1xf32, #tpu.memory_space<vmem>>, vector<128x1xf32>
      tpu.vector_store %arg7[%c0_37, %c0_38], %29 {strides = array<i32>} : memref<128x1xf32, #tpu.memory_space<vmem>>, vector<128x1xf32>,
    } else {
    }
    %true = arith.constant true
    %20 = arith.xori %17, %true : i1
    %21 = arith.extui %20 : i1 to i32
    %c0_i32_12 = arith.constant 0 : i32
    %22 = arith.cmpi ne, %21, %c0_i32_12 : i32
    scf.if %22 {
      %c0_15 = arith.constant 0 : index
      %c0_16 = arith.constant 0 : index
      %26 = vector.load %arg7[%c0_15, %c0_16] : memref<128x1xf32, #tpu.memory_space<vmem>>, vector<128x1xf32>
      %cst_17 = arith.constant dense<0xFF800000> : vector<128xf32>
      %27 = vector.multi_reduction <maximumf>, %7, %cst_17 [1] : vector<128x128xf32> to vector<128xf32>
      %28 = vector.shape_cast %27 : vector<128xf32> to vector<128x1xf32>
      %29 = arith.maximumf %26, %28 : vector<128x1xf32>
      %30 = vector.broadcast %29 : vector<128x1xf32> to vector<128x128xf32>
      %31 = arith.subf %7, %30 : vector<128x128xf32>
      %32 = math.exp %31 : vector<128x128xf32>
      %c0_18 = arith.constant 0 : index
      %c0_19 = arith.constant 0 : index
      %33 = vector.load %arg8[%c0_18, %c0_19] : memref<128x1xf32, #tpu.memory_space<vmem>>, vector<128x1xf32>
      %34 = arith.subf %26, %29 : vector<128x1xf32>
      %35 = math.exp %34 : vector<128x1xf32>
      %36 = arith.mulf %33, %35 : vector<128x1xf32>
      %cst_20 = arith.constant dense<0.000000e+00> : vector<128xf32>
      %37 = vector.multi_reduction <add>, %32, %cst_20 [1] : vector<128x128xf32> to vector<128xf32>
      %38 = vector.shape_cast %37 : vector<128xf32> to vector<128x1xf32>
      %39 = arith.addf %36, %38 : vector<128x1xf32>
      %c0_21 = arith.constant 0 : index
      %c0_22 = arith.constant 0 : index
      %40 = vector.load %arg8[%c0_21, %c0_22] : memref<128x1xf32, #tpu.memory_space<vmem>>, vector<128x1xf32>
      tpu.vector_store %arg8[%c0_21, %c0_22], %39 {strides = array<i32>} : memref<128x1xf32, #tpu.memory_space<vmem>>, vector<128x1xf32>,
      %c0_23 = arith.constant 0 : index
      %c0_24 = arith.constant 0 : index
      %41 = vector.load %arg9[%c0_23, %c0_24] : memref<128x1xf32, #tpu.memory_space<vmem>>, vector<128x1xf32>
      %cst_25 = arith.constant 0.000000e+00 : f32
      %42 = vector.broadcast %cst_25 : f32 to vector<128x128xf32>
      %43 = arith.select %10, %7, %42 : vector<128x128xi1>, vector<128x128xf32>
      %cst_26 = arith.constant dense<0.000000e+00> : vector<128xf32>
      %44 = vector.multi_reduction <add>, %43, %cst_26 [1] : vector<128x128xf32> to vector<128xf32>
      %45 = vector.shape_cast %44 : vector<128xf32> to vector<128x1xf32>
      %46 = arith.addf %41, %45 : vector<128x1xf32>
      %c0_27 = arith.constant 0 : index
      %c0_28 = arith.constant 0 : index
      %47 = vector.load %arg9[%c0_27, %c0_28] : memref<128x1xf32, #tpu.memory_space<vmem>>, vector<128x1xf32>
      tpu.vector_store %arg9[%c0_27, %c0_28], %46 {strides = array<i32>} : memref<128x1xf32, #tpu.memory_space<vmem>>, vector<128x1xf32>,
      %c0_29 = arith.constant 0 : index
      %c0_30 = arith.constant 0 : index
      %48 = vector.load %arg10[%c0_29, %c0_30] : memref<128x1xf32, #tpu.memory_space<vmem>>, vector<128x1xf32>
      %49 = arith.extui %10 : vector<128x128xi1> to vector<128x128xi32>
      %50 = arith.sitofp %49 : vector<128x128xi32> to vector<128x128xf32>
      %cst_31 = arith.constant dense<0.000000e+00> : vector<128xf32>
      %51 = vector.multi_reduction <add>, %50, %cst_31 [1] : vector<128x128xf32> to vector<128xf32>
      %52 = vector.shape_cast %51 : vector<128xf32> to vector<128x1xf32>
      %53 = arith.addf %48, %52 : vector<128x1xf32>
      %c0_32 = arith.constant 0 : index
      %c0_33 = arith.constant 0 : index
      %54 = vector.load %arg10[%c0_32, %c0_33] : memref<128x1xf32, #tpu.memory_space<vmem>>, vector<128x1xf32>
      tpu.vector_store %arg10[%c0_32, %c0_33], %53 {strides = array<i32>} : memref<128x1xf32, #tpu.memory_space<vmem>>, vector<128x1xf32>,
      %c0_34 = arith.constant 0 : index
      %c0_35 = arith.constant 0 : index
      %55 = vector.load %arg7[%c0_34, %c0_35] : memref<128x1xf32, #tpu.memory_space<vmem>>, vector<128x1xf32>
      tpu.vector_store %arg7[%c0_34, %c0_35], %29 {strides = array<i32>} : memref<128x1xf32, #tpu.memory_space<vmem>>, vector<128x1xf32>,
    } else {
    }
    %c0_i32_13 = arith.constant 0 : i32
    %23 = arith.cmpi eq, %arg1, %c0_i32_13 : i32
    %24 = arith.extui %23 : i1 to i32
    %c0_i32_14 = arith.constant 0 : i32
    %25 = arith.cmpi ne, %24, %c0_i32_14 : i32
    scf.if %25 {
      %c0_15 = arith.constant 0 : index
      %c0_16 = arith.constant 0 : index
      %26 = vector.load %arg7[%c0_15, %c0_16] : memref<128x1xf32, #tpu.memory_space<vmem>>, vector<128x1xf32>
      %c0_17 = arith.constant 0 : index
      %c0_18 = arith.constant 0 : index
      %27 = vector.load %arg8[%c0_17, %c0_18] : memref<128x1xf32, #tpu.memory_space<vmem>>, vector<128x1xf32>
      %cst_19 = arith.constant 0.000000e+00 : f32
      %28 = vector.broadcast %cst_19 : f32 to vector<128x1xf32>
      %29 = arith.subf %28, %26 : vector<128x1xf32>
      %30 = math.exp %29 : vector<128x1xf32>
      %cst_20 = arith.constant 1.150000e+02 : f32
      %31 = vector.broadcast %cst_20 : f32 to vector<128x1xf32>
      %32 = arith.mulf %31, %30 : vector<128x1xf32>
      %33 = arith.subf %27, %32 : vector<128x1xf32>
      %c0_21 = arith.constant 0 : index
      %c0_22 = arith.constant 0 : index
      %34 = vector.load %arg9[%c0_21, %c0_22] : memref<128x1xf32, #tpu.memory_space<vmem>>, vector<128x1xf32>
      %c0_23 = arith.constant 0 : index
      %c0_24 = arith.constant 0 : index
      %35 = vector.load %arg10[%c0_23, %c0_24] : memref<128x1xf32, #tpu.memory_space<vmem>>, vector<128x1xf32>
      %36 = math.log %33 : vector<128x1xf32>
      %37 = arith.addf %26, %36 : vector<128x1xf32>
      %38 = arith.mulf %35, %37 : vector<128x1xf32>
      %39 = arith.subf %34, %38 : vector<128x1xf32>
      %40 = arith.divf %39, %35 : vector<128x1xf32>
      %c128_i32_25 = arith.constant 128 : i32
      %41 = arith.muli %arg0, %c128_i32_25 : i32
      %42 = tpu.iota {dimensions = array<i32: 0>} : vector<128x1xi32>
      %43 = vector.broadcast %41 : i32 to vector<128x1xi32>
      %44 = arith.addi %43, %42 : vector<128x1xi32>
      %c8_i32 = arith.constant 8 : i32
      %45 = vector.broadcast %c8_i32 : i32 to vector<128x1xi32>
      %46 = arith.cmpi slt, %44, %45 : vector<128x1xi32>
      %cst_26 = arith.constant 0.000000e+00 : f32
      %47 = vector.broadcast %cst_26 : f32 to vector<128x1xf32>
      %48 = arith.select %46, %40, %47 : vector<128x1xi1>, vector<128x1xf32>
      %c0_27 = arith.constant 0 : index
      %c0_28 = arith.constant 0 : index
      %49 = vector.load %arg6[%c0_27, %c0_28] : memref<128x1xf32, #tpu.memory_space<vmem>>, vector<128x1xf32>
      tpu.vector_store %arg6[%c0_27, %c0_28], %48 {strides = array<i32>} : memref<128x1xf32, #tpu.memory_space<vmem>>, vector<128x1xf32>,
    } else {
    }
    return
  }
  func.func @transform_0(%arg0: i32, %arg1: i32) -> (i32, i32) {
    %c0_i32 = arith.constant 0 : i32
    %c0_i32_0 = arith.constant 0 : i32
    return %arg0, %c0_i32 : i32, i32
  }
  func.func @transform_1(%arg0: i32, %arg1: i32) -> (i32, i32) {
    %c0_i32 = arith.constant 0 : i32
    %c0_i32_0 = arith.constant 0 : i32
    return %c0_i32, %arg1 : i32, i32
  }
  func.func @transform_2(%arg0: i32, %arg1: i32) -> (i32, i32) {
    %c0_i32 = arith.constant 0 : i32
    %c0_i32_0 = arith.constant 0 : i32
    return %arg0, %c0_i32 : i32, i32
  }
  func.func @transform_3(%arg0: i32, %arg1: i32) -> (i32, i32) {
    %c0_i32 = arith.constant 0 : i32
    %c0_i32_0 = arith.constant 0 : i32
    return %c0_i32, %arg1 : i32, i32
  }
  func.func @transform_4(%arg0: i32, %arg1: i32) -> (i32, i32) {
    %c0_i32 = arith.constant 0 : i32
    %c0_i32_0 = arith.constant 0 : i32
    return %arg0, %c0_i32 : i32, i32
  }
}

</mosaic_0001>

<llo_original>
// kernel: tpu_custom_call.1
$region0: #{tpu_custom_call.1}
  #allocation0 [shape = 'u32[]', space=smem, size = 0x4, offset = 0x4, fixed_abs, tag = 'smem constant byte address 0x4 - core index']
  #allocation1 [shape = 'u32[144,128]{1,0:T(1,128)}', space=vmem, size = 0x12000, scoped, tag = 'internal scratch']
  #allocation2 [shape = 'f32[128,1]{1,0:T(8,128)}', space=vmem, size = 0x10000, scoped, tag = 'scratch operand']
  #allocation3 [shape = 'f32[128,1]{1,0:T(8,128)}', space=vmem, size = 0x10000, scoped, tag = 'scratch operand']
  #allocation4 [shape = 'f32[128,1]{1,0:T(8,128)}', space=vmem, size = 0x10000, scoped, tag = 'scratch operand']
  #allocation5 [shape = 'f32[128,1]{1,0:T(8,128)}', space=vmem, size = 0x10000, scoped, tag = 'scratch operand']
  %s0 = inlined_call_operand.vmem [shape: bf16[128,128], index: 0, kind: input, shape index: {}]
  %s1 = inlined_call_operand.vmem [shape: bf16[128,128], index: 1, kind: input, shape index: {}]
  %s2 = inlined_call_operand.vmem [shape: s32[128,1], index: 2, kind: input, shape index: {}]
  %s3 = inlined_call_operand.vmem [shape: s32[1,128], index: 3, kind: input, shape index: {}]
  %s4 = inlined_call_operand.vmem [shape: f32[128,1], index: 4, kind: output, shape index: {}]
  %s5 = sld [smem:[#allocation0]]
  $region42: #{tpu_custom_call.1} parent=0
    _
  %s7 = ssub.s32 1, %s5
  %s8 = scalar_select 0, %s7, %s5
  // Predicated region
  $region2: #{tpu_custom_call.1} parent=0 // pred_check
    _
  $region3: #{tpu_custom_call.1} parent=0 // pred_check_branch
    %10 = sbr.rel (0) target = $region5
  $region4: #{tpu_custom_call.1} parent=0 // pred_region
    _
  $region5: #{tpu_custom_call.1} parent=0 // pred_fallthru
    _
  // Predicated region
  $region6: #{tpu_custom_call.1} parent=0 // pred_check
    _
  $region7: #{tpu_custom_call.1} parent=0 // pred_check_branch
    %12 = sbr.rel (0) target = $region9
  $region8: #{tpu_custom_call.1} parent=0 // pred_region
    _
  $region9: #{tpu_custom_call.1} parent=0 // pred_fallthru
    _
  // Predicated region
  $region10: #{tpu_custom_call.1} parent=0 // pred_check
    _
  $region11: #{tpu_custom_call.1} parent=0 // pred_check_branch
    %14 = sbr.rel (0) target = $region13
  $region12: #{tpu_custom_call.1} parent=0 // pred_region
    _
  $region13: #{tpu_custom_call.1} parent=0 // pred_fallthru
    _
  // Predicated region
  $region14: #{tpu_custom_call.1} parent=0 // pred_check
    _
  $region15: #{tpu_custom_call.1} parent=0 // pred_check_branch
    %16 = sbr.rel (0) target = $region17
  $region16: #{tpu_custom_call.1} parent=0 // pred_region
    _
  $region17: #{tpu_custom_call.1} parent=0 // pred_fallthru
    _
  %p18 = scmp.eq.s32.totalorder 0, 0
  // Predicated region
  $region18: #{tpu_custom_call.1} parent=0 // pred_check
    %p19 = pneg %p18
  $region19: #{tpu_custom_call.1} parent=0 // pred_check_branch
    %21 = sbr.rel (%p19) target = $region21
  $region20: #{tpu_custom_call.1} parent=0 // pred_region
    %vm22 = vcmask 7168
    %23 = vst.msk [vmem:[#allocation2] sm:$0xff] %vm22, -inf
    %24 = vst.msk [vmem:[#allocation2 + $0x8] sm:$0xff] %vm22, -inf
    %25 = vst.msk [vmem:[#allocation2 + $0x10] sm:$0xff] %vm22, -inf
    %26 = vst.msk [vmem:[#allocation2 + $0x18] sm:$0xff] %vm22, -inf
    %27 = vst.msk [vmem:[#allocation2 + $0x20] sm:$0xff] %vm22, -inf
    %28 = vst.msk [vmem:[#allocation2 + $0x28] sm:$0xff] %vm22, -inf
    %29 = vst.msk [vmem:[#allocation2 + $0x30] sm:$0xff] %vm22, -inf
    %30 = vst.msk [vmem:[#allocation2 + $0x38] sm:$0xff] %vm22, -inf
    %31 = vst.msk [vmem:[#allocation2 + $0x40] sm:$0xff] %vm22, -inf
    %32 = vst.msk [vmem:[#allocation2 + $0x48] sm:$0xff] %vm22, -inf
    %33 = vst.msk [vmem:[#allocation2 + $0x50] sm:$0xff] %vm22, -inf
    %34 = vst.msk [vmem:[#allocation2 + $0x58] sm:$0xff] %vm22, -inf
    %35 = vst.msk [vmem:[#allocation2 + $0x60] sm:$0xff] %vm22, -inf
    %36 = vst.msk [vmem:[#allocation2 + $0x68] sm:$0xff] %vm22, -inf
    %37 = vst.msk [vmem:[#allocation2 + $0x70] sm:$0xff] %vm22, -inf
    %38 = vst.msk [vmem:[#allocation2 + $0x78] sm:$0xff] %vm22, -inf
    %39 = vst.msk [vmem:[#allocation3] sm:$0xff] %vm22, 0.0
    %40 = vst.msk [vmem:[#allocation3 + $0x8] sm:$0xff] %vm22, 0.0
    %41 = vst.msk [vmem:[#allocation3 + $0x10] sm:$0xff] %vm22, 0.0
    %42 = vst.msk [vmem:[#allocation3 + $0x18] sm:$0xff] %vm22, 0.0
    %43 = vst.msk [vmem:[#allocation3 + $0x20] sm:$0xff] %vm22, 0.0
    %44 = vst.msk [vmem:[#allocation3 + $0x28] sm:$0xff] %vm22, 0.0
    %45 = vst.msk [vmem:[#allocation3 + $0x30] sm:$0xff] %vm22, 0.0
    %46 = vst.msk [vmem:[#allocation3 + $0x38] sm:$0xff] %vm22, 0.0
    %47 = vst.msk [vmem:[#allocation3 + $0x40] sm:$0xff] %vm22, 0.0
    %48 = vst.msk [vmem:[#allocation3 + $0x48] sm:$0xff] %vm22, 0.0
    %49 = vst.msk [vmem:[#allocation3 + $0x50] sm:$0xff] %vm22, 0.0
    %50 = vst.msk [vmem:[#allocation3 + $0x58] sm:$0xff] %vm22, 0.0
    %51 = vst.msk [vmem:[#allocation3 + $0x60] sm:$0xff] %vm22, 0.0
    %52 = vst.msk [vmem:[#allocation3 + $0x68] sm:$0xff] %vm22, 0.0
    %53 = vst.msk [vmem:[#allocation3 + $0x70] sm:$0xff] %vm22, 0.0
    %54 = vst.msk [vmem:[#allocation3 + $0x78] sm:$0xff] %vm22, 0.0
    %55 = vst.msk [vmem:[#allocation4] sm:$0xff] %vm22, 0.0
    %56 = vst.msk [vmem:[#allocation4 + $0x8] sm:$0xff] %vm22, 0.0
    %57 = vst.msk [vmem:[#allocation4 + $0x10] sm:$0xff] %vm22, 0.0
    %58 = vst.msk [vmem:[#allocation4 + $0x18] sm:$0xff] %vm22, 0.0
    %59 = vst.msk [vmem:[#allocation4 + $0x20] sm:$0xff] %vm22, 0.0
    %60 = vst.msk [vmem:[#allocation4 + $0x28] sm:$0xff] %vm22, 0.0
    %61 = vst.msk [vmem:[#allocation4 + $0x30] sm:$0xff] %vm22, 0.0
    %62 = vst.msk [vmem:[#allocation4 + $0x38] sm:$0xff] %vm22, 0.0
    %63 = vst.msk [vmem:[#allocation4 + $0x40] sm:$0xff] %vm22, 0.0
    %64 = vst.msk [vmem:[#allocation4 + $0x48] sm:$0xff] %vm22, 0.0
    %65 = vst.msk [vmem:[#allocation4 + $0x50] sm:$0xff] %vm22, 0.0
    %66 = vst.msk [vmem:[#allocation4 + $0x58] sm:$0xff] %vm22, 0.0
    %67 = vst.msk [vmem:[#allocation4 + $0x60] sm:$0xff] %vm22, 0.0
    %68 = vst.msk [vmem:[#allocation4 + $0x68] sm:$0xff] %vm22, 0.0
    %69 = vst.msk [vmem:[#allocation4 + $0x70] sm:$0xff] %vm22, 0.0
    %70 = vst.msk [vmem:[#allocation4 + $0x78] sm:$0xff] %vm22, 0.0
    %71 = vst.msk [vmem:[#allocation5] sm:$0xff] %vm22, 0.0
    %72 = vst.msk [vmem:[#allocation5 + $0x8] sm:$0xff] %vm22, 0.0
    %73 = vst.msk [vmem:[#allocation5 + $0x10] sm:$0xff] %vm22, 0.0
    %74 = vst.msk [vmem:[#allocation5 + $0x18] sm:$0xff] %vm22, 0.0
    %75 = vst.msk [vmem:[#allocation5 + $0x20] sm:$0xff] %vm22, 0.0
    %76 = vst.msk [vmem:[#allocation5 + $0x28] sm:$0xff] %vm22, 0.0
    %77 = vst.msk [vmem:[#allocation5 + $0x30] sm:$0xff] %vm22, 0.0
    %78 = vst.msk [vmem:[#allocation5 + $0x38] sm:$0xff] %vm22, 0.0
    %79 = vst.msk [vmem:[#allocation5 + $0x40] sm:$0xff] %vm22, 0.0
    %80 = vst.msk [vmem:[#allocation5 + $0x48] sm:$0xff] %vm22, 0.0
    %81 = vst.msk [vmem:[#allocation5 + $0x50] sm:$0xff] %vm22, 0.0
    %82 = vst.msk [vmem:[#allocation5 + $0x58] sm:$0xff] %vm22, 0.0
    %83 = vst.msk [vmem:[#allocation5 + $0x60] sm:$0xff] %vm22, 0.0
    %84 = vst.msk [vmem:[#allocation5 + $0x68] sm:$0xff] %vm22, 0.0
    %85 = vst.msk [vmem:[#allocation5 + $0x70] sm:$0xff] %vm22, 0.0
    %86 = vst.msk [vmem:[#allocation5 + $0x78] sm:$0xff] %vm22, 0.0
  $region21: #{tpu_custom_call.1} parent=0 // pred_fallthru
    _
  %v87 = vld [vmem:[%s2] sm:$0xff]
  %v88 = vld [vmem:[%s2 + $0x8] sm:$0xff]
  %v89 = vld [vmem:[%s2 + $0x10] sm:$0xff]
  %v90 = vld [vmem:[%s2 + $0x18] sm:$0xff]
  %v91 = vld [vmem:[%s2 + $0x20] sm:$0xff]
  %v92 = vld [vmem:[%s2 + $0x28] sm:$0xff]
  %v93 = vld [vmem:[%s2 + $0x30] sm:$0xff]
  %v94 = vld [vmem:[%s2 + $0x38] sm:$0xff]
  %v95 = vld [vmem:[%s2 + $0x40] sm:$0xff]
  %v96 = vld [vmem:[%s2 + $0x48] sm:$0xff]
  %v97 = vld [vmem:[%s2 + $0x50] sm:$0xff]
  %v98 = vld [vmem:[%s2 + $0x58] sm:$0xff]
  %v99 = vld [vmem:[%s2 + $0x60] sm:$0xff]
  %v100 = vld [vmem:[%s2 + $0x68] sm:$0xff]
  %v101 = vld [vmem:[%s2 + $0x70] sm:$0xff]
  %v102 = vld [vmem:[%s2 + $0x78] sm:$0xff]
  %v103 = vld [vmem:[%s3] sm:$0x1]
  %v104 = vld [vmem:[%s0] sm:$0xf]
  %v105 = vld [vmem:[%s0 + $0x4] sm:$0xf]
  %v106 = vld [vmem:[%s0 + $0x8] sm:$0xf]
  %v107 = vld [vmem:[%s0 + $0xc] sm:$0xf]
  %v108 = vld [vmem:[%s0 + $0x10] sm:$0xf]
  %v109 = vld [vmem:[%s0 + $0x14] sm:$0xf]
  %v110 = vld [vmem:[%s0 + $0x18] sm:$0xf]
  %v111 = vld [vmem:[%s0 + $0x1c] sm:$0xf]
  %v112 = vld [vmem:[%s0 + $0x20] sm:$0xf]
  %v113 = vld [vmem:[%s0 + $0x24] sm:$0xf]
  %v114 = vld [vmem:[%s0 + $0x28] sm:$0xf]
  %v115 = vld [vmem:[%s0 + $0x2c] sm:$0xf]
  %v116 = vld [vmem:[%s0 + $0x30] sm:$0xf]
  %v117 = vld [vmem:[%s0 + $0x34] sm:$0xf]
  %v118 = vld [vmem:[%s0 + $0x38] sm:$0xf]
  %v119 = vld [vmem:[%s0 + $0x3c] sm:$0xf]
  %v120 = vld [vmem:[%s1] sm:$0xf]
  %v121 = vld [vmem:[%s1 + $0x4] sm:$0xf]
  %v122 = vld [vmem:[%s1 + $0x8] sm:$0xf]
  %v123 = vld [vmem:[%s1 + $0xc] sm:$0xf]
  %v124 = vld [vmem:[%s1 + $0x10] sm:$0xf]
  %v125 = vld [vmem:[%s1 + $0x14] sm:$0xf]
  %v126 = vld [vmem:[%s1 + $0x18] sm:$0xf]
  %v127 = vld [vmem:[%s1 + $0x1c] sm:$0xf]
  %v128 = vld [vmem:[%s1 + $0x20] sm:$0xf]
  %v129 = vld [vmem:[%s1 + $0x24] sm:$0xf]
  %v130 = vld [vmem:[%s1 + $0x28] sm:$0xf]
  %v131 = vld [vmem:[%s1 + $0x2c] sm:$0xf]
  %v132 = vld [vmem:[%s1 + $0x30] sm:$0xf]
  %v133 = vld [vmem:[%s1 + $0x34] sm:$0xf]
  %v134 = vld [vmem:[%s1 + $0x38] sm:$0xf]
  %v135 = vld [vmem:[%s1 + $0x3c] sm:$0xf]
  %v152 = vunpack.c.l.b16 %v104
  %v153 = vunpack.c.l.b16 %v105
  %v154 = vunpack.c.l.b16 %v106
  %v155 = vunpack.c.l.b16 %v107
  %v156 = vunpack.c.l.b16 %v108
  %v157 = vunpack.c.l.b16 %v109
  %v158 = vunpack.c.l.b16 %v110
  %v159 = vunpack.c.l.b16 %v111
  %v160 = vunpack.c.l.b16 %v112
  %v161 = vunpack.c.l.b16 %v113
  %v162 = vunpack.c.l.b16 %v114
  %v163 = vunpack.c.l.b16 %v115
  %v164 = vunpack.c.l.b16 %v116
  %v165 = vunpack.c.l.b16 %v117
  %v166 = vunpack.c.l.b16 %v118
  %v167 = vunpack.c.l.b16 %v119
  %v168 = vpack.c.b16 %v153, %v152
  %v169 = vpack.c.b16 %v155, %v154
  %v170 = vpack.c.b16 %v157, %v156
  %v171 = vpack.c.b16 %v159, %v158
  %v172 = vpack.c.b16 %v161, %v160
  %v173 = vpack.c.b16 %v163, %v162
  %v174 = vpack.c.b16 %v165, %v164
  %v175 = vpack.c.b16 %v167, %v166
  %v200 = vunpack.c.l.b16 %v120
  %v201 = vunpack.c.l.b16 %v121
  %v202 = vunpack.c.l.b16 %v122
  %v203 = vunpack.c.l.b16 %v123
  %v204 = vunpack.c.l.b16 %v124
  %v205 = vunpack.c.l.b16 %v125
  %v206 = vunpack.c.l.b16 %v126
  %v207 = vunpack.c.l.b16 %v127
  %v208 = vunpack.c.l.b16 %v128
  %v209 = vunpack.c.l.b16 %v129
  %v210 = vunpack.c.l.b16 %v130
  %v211 = vunpack.c.l.b16 %v131
  %v212 = vunpack.c.l.b16 %v132
  %v213 = vunpack.c.l.b16 %v133
  %v214 = vunpack.c.l.b16 %v134
  %v215 = vunpack.c.l.b16 %v135
  %v216 = vpack.c.b16 %v201, %v200
  %v217 = vpack.c.b16 %v203, %v202
  %v218 = vpack.c.b16 %v205, %v204
  %v219 = vpack.c.b16 %v207, %v206
  %v220 = vpack.c.b16 %v209, %v208
  %v221 = vpack.c.b16 %v211, %v210
  %v222 = vpack.c.b16 %v213, %v212
  %v223 = vpack.c.b16 %v215, %v214
  %232 = vmatprep.subr.bf16.mxu0 0
  %233 = vmatpush1.bf16.msra.mxu0 %v223
  %234 = vmatprep.subr.bf16.mxu0 0
  %235 = vmatpush1.bf16.msra.mxu0 %v222
  %236 = vmatprep.subr.bf16.mxu0 0
  %237 = vmatpush1.bf16.msra.mxu0 %v221
  %238 = vmatprep.subr.bf16.mxu0 0
  %239 = vmatpush1.bf16.msra.mxu0 %v220
  %240 = vmatprep.subr.bf16.mxu0 0
  %241 = vmatpush1.bf16.msra.mxu0 %v219
  %242 = vmatprep.subr.bf16.mxu0 0
  %243 = vmatpush1.bf16.msra.mxu0 %v218
  %244 = vmatprep.subr.bf16.mxu0 0
  %245 = vmatpush1.bf16.msra.mxu0 %v217
  %246 = vmatprep.subr.bf16.mxu0 0
  %247 = vmatpush1.bf16.msra.mxu0 %v216
  %248 = vmatprep.subr.bf16.mxu0 0
  %249 = vmatpush2.bf16.msra.mxu0 0
  %250 = vmatprep.subr.bf16.mxu0 0
  %251 = vmatpush2.bf16.msra.mxu0 0
  %252 = vmatprep.subr.bf16.mxu0 0
  %253 = vmatpush2.bf16.msra.mxu0 0
  %254 = vmatprep.subr.bf16.mxu0 0
  %255 = vmatpush2.bf16.msra.mxu0 0
  %256 = vmatprep.subr.bf16.mxu0 0
  %257 = vmatpush2.bf16.msra.mxu0 0
  %258 = vmatprep.subr.bf16.mxu0 0
  %259 = vmatpush2.bf16.msra.mxu0 0
  %260 = vmatprep.subr.bf16.mxu0 0
  %261 = vmatpush2.bf16.msra.mxu0 0
  %262 = vmatprep.subr.bf16.mxu0 0
  %263 = vmatpush2.bf16.msra.mxu0 0
  %264 = vmatprep.mubr.bf16.mxu0 0
  %265 = vmatmul.mubr.bf16.gmra.mxu0 %v168
  %v266 = vpop.f32.mrf.mxu0
  %v267 = vadd.f32 0.0, %v266
  %v268 = vpop.f32.mrf.mxu0
  %v269 = vpop.f32.mrf.mxu0
  %v270 = vadd.f32 0.0, %v269
  %v271 = vpop.f32.mrf.mxu0
  %272 = vmatprep.mubr.bf16.mxu0 0
  %273 = vmatmul.mubr.bf16.gmra.mxu0 %v169
  %v274 = vpop.f32.mrf.mxu0
  %v275 = vadd.f32 0.0, %v274
  %v276 = vpop.f32.mrf.mxu0
  %v277 = vpop.f32.mrf.mxu0
  %v278 = vadd.f32 0.0, %v277
  %v279 = vpop.f32.mrf.mxu0
  %280 = vmatprep.mubr.bf16.mxu0 0
  %281 = vmatmul.mubr.bf16.gmra.mxu0 %v170
  %v282 = vpop.f32.mrf.mxu0
  %v283 = vadd.f32 0.0, %v282
  %v284 = vpop.f32.mrf.mxu0
  %v285 = vpop.f32.mrf.mxu0
  %v286 = vadd.f32 0.0, %v285
  %v287 = vpop.f32.mrf.mxu0
  %288 = vmatprep.mubr.bf16.mxu0 0
  %289 = vmatmul.mubr.bf16.gmra.mxu0 %v171
  %v290 = vpop.f32.mrf.mxu0
  %v291 = vadd.f32 0.0, %v290
  %v292 = vpop.f32.mrf.mxu0
  %v293 = vpop.f32.mrf.mxu0
  %v294 = vadd.f32 0.0, %v293
  %v295 = vpop.f32.mrf.mxu0
  %296 = vmatprep.mubr.bf16.mxu0 0
  %297 = vmatmul.mubr.bf16.gmra.mxu0 %v172
  %v298 = vpop.f32.mrf.mxu0
  %v299 = vadd.f32 0.0, %v298
  %v300 = vpop.f32.mrf.mxu0
  %v301 = vpop.f32.mrf.mxu0
  %v302 = vadd.f32 0.0, %v301
  %v303 = vpop.f32.mrf.mxu0
  %304 = vmatprep.mubr.bf16.mxu0 0
  %305 = vmatmul.mubr.bf16.gmra.mxu0 %v173
  %v306 = vpop.f32.mrf.mxu0
  %v307 = vadd.f32 0.0, %v306
  %v308 = vpop.f32.mrf.mxu0
  %v309 = vpop.f32.mrf.mxu0
  %v310 = vadd.f32 0.0, %v309
  %v311 = vpop.f32.mrf.mxu0
  %312 = vmatprep.mubr.bf16.mxu0 0
  %313 = vmatmul.mubr.bf16.gmra.mxu0 %v174
  %v314 = vpop.f32.mrf.mxu0
  %v315 = vadd.f32 0.0, %v314
  %v316 = vpop.f32.mrf.mxu0
  %v317 = vpop.f32.mrf.mxu0
  %v318 = vadd.f32 0.0, %v317
  %v319 = vpop.f32.mrf.mxu0
  %320 = vmatprep.mubr.bf16.mxu0 0
  %321 = vmatmul.mubr.bf16.gmra.mxu0 %v175
  %v322 = vpop.f32.mrf.mxu0
  %v323 = vadd.f32 0.0, %v322
  %v324 = vpop.f32.mrf.mxu0
  %v325 = vpop.f32.mrf.mxu0
  %v326 = vadd.f32 0.0, %v325
  %v327 = vpop.f32.mrf.mxu0
  %328 = vdwg.mxu0
  %329 = vset.pattern.permute.xlu0 0
  %330 = vperm.xlu0 %329, %v87
  %v331 = vpop.permute.xlu0 %330
  %332 = vset.pattern.permute.xlu0 0
  %333 = vperm.xlu0 %332, %v88
  %v334 = vpop.permute.xlu0 %333
  %335 = vset.pattern.permute.xlu0 0
  %336 = vperm.xlu0 %335, %v89
  %v337 = vpop.permute.xlu0 %336
  %338 = vset.pattern.permute.xlu0 0
  %339 = vperm.xlu0 %338, %v90
  %v340 = vpop.permute.xlu0 %339
  %341 = vset.pattern.permute.xlu0 0
  %342 = vperm.xlu0 %341, %v91
  %v343 = vpop.permute.xlu0 %342
  %344 = vset.pattern.permute.xlu0 0
  %345 = vperm.xlu0 %344, %v92
  %v346 = vpop.permute.xlu0 %345
  %347 = vset.pattern.permute.xlu0 0
  %348 = vperm.xlu0 %347, %v93
  %v349 = vpop.permute.xlu0 %348
  %350 = vset.pattern.permute.xlu0 0
  %351 = vperm.xlu0 %350, %v94
  %v352 = vpop.permute.xlu0 %351
  %353 = vset.pattern.permute.xlu0 0
  %354 = vperm.xlu0 %353, %v95
  %v355 = vpop.permute.xlu0 %354
  %356 = vset.pattern.permute.xlu0 0
  %357 = vperm.xlu0 %356, %v96
  %v358 = vpop.permute.xlu0 %357
  %359 = vset.pattern.permute.xlu0 0
  %360 = vperm.xlu0 %359, %v97
  %v361 = vpop.permute.xlu0 %360
  %362 = vset.pattern.permute.xlu0 0
  %363 = vperm.xlu0 %362, %v98
  %v364 = vpop.permute.xlu0 %363
  %365 = vset.pattern.permute.xlu0 0
  %366 = vperm.xlu0 %365, %v99
  %v367 = vpop.permute.xlu0 %366
  %368 = vset.pattern.permute.xlu0 0
  %369 = vperm.xlu0 %368, %v100
  %v370 = vpop.permute.xlu0 %369
  %371 = vset.pattern.permute.xlu0 0
  %372 = vperm.xlu0 %371, %v101
  %v373 = vpop.permute.xlu0 %372
  %374 = vset.pattern.permute.xlu0 0
  %375 = vperm.xlu0 %374, %v102
  %v376 = vpop.permute.xlu0 %375
  %v377 = vlaneseq
  %v378 = vshrl.u32 %v377, 7
  %v379 = vsub.s32 0, %v378
  %v380 = vrot.slane %v103, %v379
  %vm381 = vcmp.eq.s32.totalorder %v331, %v380
  %vm382 = vcmp.eq.s32.totalorder %v334, %v380
  %vm383 = vcmp.eq.s32.totalorder %v337, %v380
  %vm384 = vcmp.eq.s32.totalorder %v340, %v380
  %vm385 = vcmp.eq.s32.totalorder %v343, %v380
  %vm386 = vcmp.eq.s32.totalorder %v346, %v380
  %vm387 = vcmp.eq.s32.totalorder %v349, %v380
  %vm388 = vcmp.eq.s32.totalorder %v352, %v380
  %vm389 = vcmp.eq.s32.totalorder %v355, %v380
  %vm390 = vcmp.eq.s32.totalorder %v358, %v380
  %vm391 = vcmp.eq.s32.totalorder %v361, %v380
  %vm392 = vcmp.eq.s32.totalorder %v364, %v380
  %vm393 = vcmp.eq.s32.totalorder %v367, %v380
  %vm394 = vcmp.eq.s32.totalorder %v370, %v380
  %vm395 = vcmp.eq.s32.totalorder %v373, %v380
  %vm396 = vcmp.eq.s32.totalorder %v376, %v380
  %s397 = smul.u32 0, 128
  %s398 = smul.u32 0, 128
  %s399 = sadd.s32 %s397, 128
  %p400 = scmp.lt.s32.totalorder %s398, %s399
  %s401 = sadd.s32 %s398, 128
  %p402 = scmp.lt.s32.totalorder %s397, %s401
  %p403 = pnand %p400, %p402
  %p404 = pneg %p403
  // Predicated region
  $region22: #{tpu_custom_call.1} parent=0 // pred_check
    _
  $region23: #{tpu_custom_call.1} parent=0 // pred_check_branch
    %406 = sbr.rel (%p403) target = $region25
  $region24: #{tpu_custom_call.1} parent=0 // pred_region
    %v407 = vld [vmem:[#allocation2] sm:$0xff]
    %v408 = vld [vmem:[#allocation2 + $0x8] sm:$0xff]
    %v409 = vld [vmem:[#allocation2 + $0x10] sm:$0xff]
    %v410 = vld [vmem:[#allocation2 + $0x18] sm:$0xff]
    %v411 = vld [vmem:[#allocation2 + $0x20] sm:$0xff]
    %v412 = vld [vmem:[#allocation2 + $0x28] sm:$0xff]
    %v413 = vld [vmem:[#allocation2 + $0x30] sm:$0xff]
    %v414 = vld [vmem:[#allocation2 + $0x38] sm:$0xff]
    %v415 = vld [vmem:[#allocation2 + $0x40] sm:$0xff]
    %v416 = vld [vmem:[#allocation2 + $0x48] sm:$0xff]
    %v417 = vld [vmem:[#allocation2 + $0x50] sm:$0xff]
    %v418 = vld [vmem:[#allocation2 + $0x58] sm:$0xff]
    %v419 = vld [vmem:[#allocation2 + $0x60] sm:$0xff]
    %v420 = vld [vmem:[#allocation2 + $0x68] sm:$0xff]
    %v421 = vld [vmem:[#allocation2 + $0x70] sm:$0xff]
    %v422 = vld [vmem:[#allocation2 + $0x78] sm:$0xff]
    %423 = vmax.xlane.f32.xlu0 %v267
    %v424 = vpop.xlane.xlu0 %423
    %425 = vmax.xlane.f32.xlu0 %v270
    %v426 = vpop.xlane.xlu0 %425
    %427 = vmax.xlane.f32.xlu0 %v275
    %v428 = vpop.xlane.xlu0 %427
    %429 = vmax.xlane.f32.xlu0 %v278
    %v430 = vpop.xlane.xlu0 %429
    %431 = vmax.xlane.f32.xlu0 %v283
    %v432 = vpop.xlane.xlu0 %431
    %433 = vmax.xlane.f32.xlu0 %v286
    %v434 = vpop.xlane.xlu0 %433
    %435 = vmax.xlane.f32.xlu0 %v291
    %v436 = vpop.xlane.xlu0 %435
    %437 = vmax.xlane.f32.xlu0 %v294
    %v438 = vpop.xlane.xlu0 %437
    %439 = vmax.xlane.f32.xlu0 %v299
    %v440 = vpop.xlane.xlu0 %439
    %441 = vmax.xlane.f32.xlu0 %v302
    %v442 = vpop.xlane.xlu0 %441
    %443 = vmax.xlane.f32.xlu0 %v307
    %v444 = vpop.xlane.xlu0 %443
    %445 = vmax.xlane.f32.xlu0 %v310
    %v446 = vpop.xlane.xlu0 %445
    %447 = vmax.xlane.f32.xlu0 %v315
    %v448 = vpop.xlane.xlu0 %447
    %449 = vmax.xlane.f32.xlu0 %v318
    %v450 = vpop.xlane.xlu0 %449
    %451 = vmax.xlane.f32.xlu0 %v323
    %v452 = vpop.xlane.xlu0 %451
    %453 = vmax.xlane.f32.xlu0 %v326
    %v454 = vpop.xlane.xlu0 %453
    %v455 = vmax.f32 %v407, %v424
    %v456 = vmax.f32 %v408, %v426
    %v457 = vmax.f32 %v409, %v428
    %v458 = vmax.f32 %v410, %v430
    %v459 = vmax.f32 %v411, %v432
    %v460 = vmax.f32 %v412, %v434
    %v461 = vmax.f32 %v413, %v436
    %v462 = vmax.f32 %v414, %v438
    %v463 = vmax.f32 %v415, %v440
    %v464 = vmax.f32 %v416, %v442
    %v465 = vmax.f32 %v417, %v444
    %v466 = vmax.f32 %v418, %v446
    %v467 = vmax.f32 %v419, %v448
    %v468 = vmax.f32 %v420, %v450
    %v469 = vmax.f32 %v421, %v452
    %v470 = vmax.f32 %v422, %v454
    %472 = vset.pattern.permute.xlu0 0
    %473 = vperm.xlu0 %472, %v455
    %v474 = vpop.permute.xlu0 %473
    %477 = vset.pattern.permute.xlu0 0
    %478 = vperm.xlu0 %477, %v456
    %v479 = vpop.permute.xlu0 %478
    %482 = vset.pattern.permute.xlu0 0
    %483 = vperm.xlu0 %482, %v457
    %v484 = vpop.permute.xlu0 %483
    %487 = vset.pattern.permute.xlu0 0
    %488 = vperm.xlu0 %487, %v458
    %v489 = vpop.permute.xlu0 %488
    %492 = vset.pattern.permute.xlu0 0
    %493 = vperm.xlu0 %492, %v459
    %v494 = vpop.permute.xlu0 %493
    %497 = vset.pattern.permute.xlu0 0
    %498 = vperm.xlu0 %497, %v460
    %v499 = vpop.permute.xlu0 %498
    %502 = vset.pattern.permute.xlu0 0
    %503 = vperm.xlu0 %502, %v461
    %v504 = vpop.permute.xlu0 %503
    %507 = vset.pattern.permute.xlu0 0
    %508 = vperm.xlu0 %507, %v462
    %v509 = vpop.permute.xlu0 %508
    %512 = vset.pattern.permute.xlu0 0
    %513 = vperm.xlu0 %512, %v463
    %v514 = vpop.permute.xlu0 %513
    %517 = vset.pattern.permute.xlu0 0
    %518 = vperm.xlu0 %517, %v464
    %v519 = vpop.permute.xlu0 %518
    %522 = vset.pattern.permute.xlu0 0
    %523 = vperm.xlu0 %522, %v465
    %v524 = vpop.permute.xlu0 %523
    %527 = vset.pattern.permute.xlu0 0
    %528 = vperm.xlu0 %527, %v466
    %v529 = vpop.permute.xlu0 %528
    %532 = vset.pattern.permute.xlu0 0
    %533 = vperm.xlu0 %532, %v467
    %v534 = vpop.permute.xlu0 %533
    %537 = vset.pattern.permute.xlu0 0
    %538 = vperm.xlu0 %537, %v468
    %v539 = vpop.permute.xlu0 %538
    %542 = vset.pattern.permute.xlu0 0
    %543 = vperm.xlu0 %542, %v469
    %v544 = vpop.permute.xlu0 %543
    %547 = vset.pattern.permute.xlu0 0
    %548 = vperm.xlu0 %547, %v470
    %v549 = vpop.permute.xlu0 %548
    %v551 = vsub.f32 %v267, %v474
    %v552 = vsub.f32 %v270, %v479
    %v553 = vsub.f32 %v275, %v484
    %v554 = vsub.f32 %v278, %v489
    %v555 = vsub.f32 %v283, %v494
    %v556 = vsub.f32 %v286, %v499
    %v557 = vsub.f32 %v291, %v504
    %v558 = vsub.f32 %v294, %v509
    %v559 = vsub.f32 %v299, %v514
    %v560 = vsub.f32 %v302, %v519
    %v561 = vsub.f32 %v307, %v524
    %v562 = vsub.f32 %v310, %v529
    %v563 = vsub.f32 %v315, %v534
    %v564 = vsub.f32 %v318, %v539
    %v565 = vsub.f32 %v323, %v544
    %v566 = vsub.f32 %v326, %v549
    %v567 = vmul.f32 %v551, 1.442695
    %v568 = vpow.pop %v567
    %v569 = vmul.f32 %v552, 1.442695
    %v570 = vpow.pop %v569
    %v571 = vmul.f32 %v553, 1.442695
    %v572 = vpow.pop %v571
    %v573 = vmul.f32 %v554, 1.442695
    %v574 = vpow.pop %v573
    %v575 = vmul.f32 %v555, 1.442695
    %v576 = vpow.pop %v575
    %v577 = vmul.f32 %v556, 1.442695
    %v578 = vpow.pop %v577
    %v579 = vmul.f32 %v557, 1.442695
    %v580 = vpow.pop %v579
    %v581 = vmul.f32 %v558, 1.442695
    %v582 = vpow.pop %v581
    %v583 = vmul.f32 %v559, 1.442695
    %v584 = vpow.pop %v583
    %v585 = vmul.f32 %v560, 1.442695
    %v586 = vpow.pop %v585
    %v587 = vmul.f32 %v561, 1.442695
    %v588 = vpow.pop %v587
    %v589 = vmul.f32 %v562, 1.442695
    %v590 = vpow.pop %v589
    %v591 = vmul.f32 %v563, 1.442695
    %v592 = vpow.pop %v591
    %v593 = vmul.f32 %v564, 1.442695
    %v594 = vpow.pop %v593
    %v595 = vmul.f32 %v565, 1.442695
    %v596 = vpow.pop %v595
    %v597 = vmul.f32 %v566, 1.442695
    %v598 = vpow.pop %v597
    %v599 = vlaneseq
    %v600 = vshrl.u32 %v599, 7
    %v601 = vadd.s32 %v600, 8
    %v602 = vadd.s32 %v600, 16
    %v603 = vadd.s32 %v600, 24
    %v604 = vadd.s32 %v600, 32
    %v605 = vadd.s32 %v600, 40
    %v606 = vadd.s32 %v600, 48
    %v607 = vadd.s32 %v600, 56
    %v608 = vadd.s32 %v600, 64
    %v609 = vadd.s32 %v600, 72
    %v610 = vadd.s32 %v600, 80
    %v611 = vadd.s32 %v600, 88
    %v612 = vadd.s32 %v600, 96
    %v613 = vadd.s32 %v600, 104
    %v614 = vadd.s32 %v600, 112
    %v615 = vadd.s32 %v600, 120
    %v616 = vstv %s397
    %v617 = vadd.s32 %v616, %v600
    %v618 = vadd.s32 %v616, %v601
    %v619 = vadd.s32 %v616, %v602
    %v620 = vadd.s32 %v616, %v603
    %v621 = vadd.s32 %v616, %v604
    %v622 = vadd.s32 %v616, %v605
    %v623 = vadd.s32 %v616, %v606
    %v624 = vadd.s32 %v616, %v607
    %v625 = vadd.s32 %v616, %v608
    %v626 = vadd.s32 %v616, %v609
    %v627 = vadd.s32 %v616, %v610
    %v628 = vadd.s32 %v616, %v611
    %v629 = vadd.s32 %v616, %v612
    %v630 = vadd.s32 %v616, %v613
    %v631 = vadd.s32 %v616, %v614
    %v632 = vadd.s32 %v616, %v615
    %v633 = vlaneseq
    %v634 = vand.u32 %v633, 127
    %v635 = vstv %s398
    %v636 = vadd.s32 %v635, %v634
    %vm637 = vcmp.ne.s32.totalorder %v617, %v636
    %vm638 = vcmp.ne.s32.totalorder %v618, %v636
    %vm639 = vcmp.ne.s32.totalorder %v619, %v636
    %vm640 = vcmp.ne.s32.totalorder %v620, %v636
    %vm641 = vcmp.ne.s32.totalorder %v621, %v636
    %vm642 = vcmp.ne.s32.totalorder %v622, %v636
    %vm643 = vcmp.ne.s32.totalorder %v623, %v636
    %vm644 = vcmp.ne.s32.totalorder %v624, %v636
    %vm645 = vcmp.ne.s32.totalorder %v625, %v636
    %vm646 = vcmp.ne.s32.totalorder %v626, %v636
    %vm647 = vcmp.ne.s32.totalorder %v627, %v636
    %vm648 = vcmp.ne.s32.totalorder %v628, %v636
    %vm649 = vcmp.ne.s32.totalorder %v629, %v636
    %vm650 = vcmp.ne.s32.totalorder %v630, %v636
    %vm651 = vcmp.ne.s32.totalorder %v631, %v636
    %vm652 = vcmp.ne.s32.totalorder %v632, %v636
    %v653 = vsel %vm637, %v568, 0.0
    %v654 = vsel %vm638, %v570, 0.0
    %v655 = vsel %vm639, %v572, 0.0
    %v656 = vsel %vm640, %v574, 0.0
    %v657 = vsel %vm641, %v576, 0.0
    %v658 = vsel %vm642, %v578, 0.0
    %v659 = vsel %vm643, %v580, 0.0
    %v660 = vsel %vm644, %v582, 0.0
    %v661 = vsel %vm645, %v584, 0.0
    %v662 = vsel %vm646, %v586, 0.0
    %v663 = vsel %vm647, %v588, 0.0
    %v664 = vsel %vm648, %v590, 0.0
    %v665 = vsel %vm649, %v592, 0.0
    %v666 = vsel %vm650, %v594, 0.0
    %v667 = vsel %vm651, %v596, 0.0
    %v668 = vsel %vm652, %v598, 0.0
    %vm669 = vmand %vm381, %vm637
    %vm670 = vmand %vm382, %vm638
    %vm671 = vmand %vm383, %vm639
    %vm672 = vmand %vm384, %vm640
    %vm673 = vmand %vm385, %vm641
    %vm674 = vmand %vm386, %vm642
    %vm675 = vmand %vm387, %vm643
    %vm676 = vmand %vm388, %vm644
    %vm677 = vmand %vm389, %vm645
    %vm678 = vmand %vm390, %vm646
    %vm679 = vmand %vm391, %vm647
    %vm680 = vmand %vm392, %vm648
    %vm681 = vmand %vm393, %vm649
    %vm682 = vmand %vm394, %vm650
    %vm683 = vmand %vm395, %vm651
    %vm684 = vmand %vm396, %vm652
    %v685 = vld [vmem:[#allocation3] sm:$0xff]
    %v686 = vld [vmem:[#allocation3 + $0x8] sm:$0xff]
    %v687 = vld [vmem:[#allocation3 + $0x10] sm:$0xff]
    %v688 = vld [vmem:[#allocation3 + $0x18] sm:$0xff]
    %v689 = vld [vmem:[#allocation3 + $0x20] sm:$0xff]
    %v690 = vld [vmem:[#allocation3 + $0x28] sm:$0xff]
    %v691 = vld [vmem:[#allocation3 + $0x30] sm:$0xff]
    %v692 = vld [vmem:[#allocation3 + $0x38] sm:$0xff]
    %v693 = vld [vmem:[#allocation3 + $0x40] sm:$0xff]
    %v694 = vld [vmem:[#allocation3 + $0x48] sm:$0xff]
    %v695 = vld [vmem:[#allocation3 + $0x50] sm:$0xff]
    %v696 = vld [vmem:[#allocation3 + $0x58] sm:$0xff]
    %v697 = vld [vmem:[#allocation3 + $0x60] sm:$0xff]
    %v698 = vld [vmem:[#allocation3 + $0x68] sm:$0xff]
    %v699 = vld [vmem:[#allocation3 + $0x70] sm:$0xff]
    %v700 = vld [vmem:[#allocation3 + $0x78] sm:$0xff]
    %v701 = vsub.f32 %v407, %v455
    %v702 = vsub.f32 %v408, %v456
    %v703 = vsub.f32 %v409, %v457
    %v704 = vsub.f32 %v410, %v458
    %v705 = vsub.f32 %v411, %v459
    %v706 = vsub.f32 %v412, %v460
    %v707 = vsub.f32 %v413, %v461
    %v708 = vsub.f32 %v414, %v462
    %v709 = vsub.f32 %v415, %v463
    %v710 = vsub.f32 %v416, %v464
    %v711 = vsub.f32 %v417, %v465
    %v712 = vsub.f32 %v418, %v466
    %v713 = vsub.f32 %v419, %v467
    %v714 = vsub.f32 %v420, %v468
    %v715 = vsub.f32 %v421, %v469
    %v716 = vsub.f32 %v422, %v470
    %v717 = vmul.f32 %v701, 1.442695
    %v718 = vpow.pop %v717
    %v719 = vmul.f32 %v702, 1.442695
    %v720 = vpow.pop %v719
    %v721 = vmul.f32 %v703, 1.442695
    %v722 = vpow.pop %v721
    %v723 = vmul.f32 %v704, 1.442695
    %v724 = vpow.pop %v723
    %v725 = vmul.f32 %v705, 1.442695
    %v726 = vpow.pop %v725
    %v727 = vmul.f32 %v706, 1.442695
    %v728 = vpow.pop %v727
    %v729 = vmul.f32 %v707, 1.442695
    %v730 = vpow.pop %v729
    %v731 = vmul.f32 %v708, 1.442695
    %v732 = vpow.pop %v731
    %v733 = vmul.f32 %v709, 1.442695
    %v734 = vpow.pop %v733
    %v735 = vmul.f32 %v710, 1.442695
    %v736 = vpow.pop %v735
    %v737 = vmul.f32 %v711, 1.442695
    %v738 = vpow.pop %v737
    %v739 = vmul.f32 %v712, 1.442695
    %v740 = vpow.pop %v739
    %v741 = vmul.f32 %v713, 1.442695
    %v742 = vpow.pop %v741
    %v743 = vmul.f32 %v714, 1.442695
    %v744 = vpow.pop %v743
    %v745 = vmul.f32 %v715, 1.442695
    %v746 = vpow.pop %v745
    %v747 = vmul.f32 %v716, 1.442695
    %v748 = vpow.pop %v747
    %v749 = vmul.f32 %v685, %v718
    %v750 = vmul.f32 %v686, %v720
    %v751 = vmul.f32 %v687, %v722
    %v752 = vmul.f32 %v688, %v724
    %v753 = vmul.f32 %v689, %v726
    %v754 = vmul.f32 %v690, %v728
    %v755 = vmul.f32 %v691, %v730
    %v756 = vmul.f32 %v692, %v732
    %v757 = vmul.f32 %v693, %v734
    %v758 = vmul.f32 %v694, %v736
    %v759 = vmul.f32 %v695, %v738
    %v760 = vmul.f32 %v696, %v740
    %v761 = vmul.f32 %v697, %v742
    %v762 = vmul.f32 %v698, %v744
    %v763 = vmul.f32 %v699, %v746
    %v764 = vmul.f32 %v700, %v748
    %765 = vadd.xlane.f32.xlu0 %v653
    %v766 = vpop.xlane.xlu0 %765
    %767 = vadd.xlane.f32.xlu0 %v654
    %v768 = vpop.xlane.xlu0 %767
    %769 = vadd.xlane.f32.xlu0 %v655
    %v770 = vpop.xlane.xlu0 %769
    %771 = vadd.xlane.f32.xlu0 %v656
    %v772 = vpop.xlane.xlu0 %771
    %773 = vadd.xlane.f32.xlu0 %v657
    %v774 = vpop.xlane.xlu0 %773
    %775 = vadd.xlane.f32.xlu0 %v658
    %v776 = vpop.xlane.xlu0 %775
    %777 = vadd.xlane.f32.xlu0 %v659
    %v778 = vpop.xlane.xlu0 %777
    %779 = vadd.xlane.f32.xlu0 %v660
    %v780 = vpop.xlane.xlu0 %779
    %781 = vadd.xlane.f32.xlu0 %v661
    %v782 = vpop.xlane.xlu0 %781
    %783 = vadd.xlane.f32.xlu0 %v662
    %v784 = vpop.xlane.xlu0 %783
    %785 = vadd.xlane.f32.xlu0 %v663
    %v786 = vpop.xlane.xlu0 %785
    %787 = vadd.xlane.f32.xlu0 %v664
    %v788 = vpop.xlane.xlu0 %787
    %789 = vadd.xlane.f32.xlu0 %v665
    %v790 = vpop.xlane.xlu0 %789
    %791 = vadd.xlane.f32.xlu0 %v666
    %v792 = vpop.xlane.xlu0 %791
    %793 = vadd.xlane.f32.xlu0 %v667
    %v794 = vpop.xlane.xlu0 %793
    %795 = vadd.xlane.f32.xlu0 %v668
    %v796 = vpop.xlane.xlu0 %795
    %v797 = vadd.f32 %v749, %v766
    %v798 = vadd.f32 %v750, %v768
    %v799 = vadd.f32 %v751, %v770
    %v800 = vadd.f32 %v752, %v772
    %v801 = vadd.f32 %v753, %v774
    %v802 = vadd.f32 %v754, %v776
    %v803 = vadd.f32 %v755, %v778
    %v804 = vadd.f32 %v756, %v780
    %v805 = vadd.f32 %v757, %v782
    %v806 = vadd.f32 %v758, %v784
    %v807 = vadd.f32 %v759, %v786
    %v808 = vadd.f32 %v760, %v788
    %v809 = vadd.f32 %v761, %v790
    %v810 = vadd.f32 %v762, %v792
    %v811 = vadd.f32 %v763, %v794
    %v812 = vadd.f32 %v764, %v796
    %vm813 = vcmask 7168
    %814 = vst.msk [vmem:[#allocation3] sm:$0xff] %vm813, %v797
    %815 = vst.msk [vmem:[#allocation3 + $0x8] sm:$0xff] %vm813, %v798
    %816 = vst.msk [vmem:[#allocation3 + $0x10] sm:$0xff] %vm813, %v799
    %817 = vst.msk [vmem:[#allocation3 + $0x18] sm:$0xff] %vm813, %v800
    %818 = vst.msk [vmem:[#allocation3 + $0x20] sm:$0xff] %vm813, %v801
    %819 = vst.msk [vmem:[#allocation3 + $0x28] sm:$0xff] %vm813, %v802
    %820 = vst.msk [vmem:[#allocation3 + $0x30] sm:$0xff] %vm813, %v803
    %821 = vst.msk [vmem:[#allocation3 + $0x38] sm:$0xff] %vm813, %v804
    %822 = vst.msk [vmem:[#allocation3 + $0x40] sm:$0xff] %vm813, %v805
    %823 = vst.msk [vmem:[#allocation3 + $0x48] sm:$0xff] %vm813, %v806
    %824 = vst.msk [vmem:[#allocation3 + $0x50] sm:$0xff] %vm813, %v807
    %825 = vst.msk [vmem:[#allocation3 + $0x58] sm:$0xff] %vm813, %v808
    %826 = vst.msk [vmem:[#allocation3 + $0x60] sm:$0xff] %vm813, %v809
    %827 = vst.msk [vmem:[#allocation3 + $0x68] sm:$0xff] %vm813, %v810
    %828 = vst.msk [vmem:[#allocation3 + $0x70] sm:$0xff] %vm813, %v811
    %829 = vst.msk [vmem:[#allocation3 + $0x78] sm:$0xff] %vm813, %v812
    %v830 = vld [vmem:[#allocation4] sm:$0xff]
    %v831 = vld [vmem:[#allocation4 + $0x8] sm:$0xff]
    %v832 = vld [vmem:[#allocation4 + $0x10] sm:$0xff]
    %v833 = vld [vmem:[#allocation4 + $0x18] sm:$0xff]
    %v834 = vld [vmem:[#allocation4 + $0x20] sm:$0xff]
    %v835 = vld [vmem:[#allocation4 + $0x28] sm:$0xff]
    %v836 = vld [vmem:[#allocation4 + $0x30] sm:$0xff]
    %v837 = vld [vmem:[#allocation4 + $0x38] sm:$0xff]
    %v838 = vld [vmem:[#allocation4 + $0x40] sm:$0xff]
    %v839 = vld [vmem:[#allocation4 + $0x48] sm:$0xff]
    %v840 = vld [vmem:[#allocation4 + $0x50] sm:$0xff]
    %v841 = vld [vmem:[#allocation4 + $0x58] sm:$0xff]
    %v842 = vld [vmem:[#allocation4 + $0x60] sm:$0xff]
    %v843 = vld [vmem:[#allocation4 + $0x68] sm:$0xff]
    %v844 = vld [vmem:[#allocation4 + $0x70] sm:$0xff]
    %v845 = vld [vmem:[#allocation4 + $0x78] sm:$0xff]
    %v846 = vsel %vm669, %v267, 0.0
    %v847 = vsel %vm670, %v270, 0.0
    %v848 = vsel %vm671, %v275, 0.0
    %v849 = vsel %vm672, %v278, 0.0
    %v850 = vsel %vm673, %v283, 0.0
    %v851 = vsel %vm674, %v286, 0.0
    %v852 = vsel %vm675, %v291, 0.0
    %v853 = vsel %vm676, %v294, 0.0
    %v854 = vsel %vm677, %v299, 0.0
    %v855 = vsel %vm678, %v302, 0.0
    %v856 = vsel %vm679, %v307, 0.0
    %v857 = vsel %vm680, %v310, 0.0
    %v858 = vsel %vm681, %v315, 0.0
    %v859 = vsel %vm682, %v318, 0.0
    %v860 = vsel %vm683, %v323, 0.0
    %v861 = vsel %vm684, %v326, 0.0
    %862 = vadd.xlane.f32.xlu0 %v846
    %v863 = vpop.xlane.xlu0 %862
    %864 = vadd.xlane.f32.xlu0 %v847
    %v865 = vpop.xlane.xlu0 %864
    %866 = vadd.xlane.f32.xlu0 %v848
    %v867 = vpop.xlane.xlu0 %866
    %868 = vadd.xlane.f32.xlu0 %v849
    %v869 = vpop.xlane.xlu0 %868
    %870 = vadd.xlane.f32.xlu0 %v850
    %v871 = vpop.xlane.xlu0 %870
    %872 = vadd.xlane.f32.xlu0 %v851
    %v873 = vpop.xlane.xlu0 %872
    %874 = vadd.xlane.f32.xlu0 %v852
    %v875 = vpop.xlane.xlu0 %874
    %876 = vadd.xlane.f32.xlu0 %v853
    %v877 = vpop.xlane.xlu0 %876
    %878 = vadd.xlane.f32.xlu0 %v854
    %v879 = vpop.xlane.xlu0 %878
    %880 = vadd.xlane.f32.xlu0 %v855
    %v881 = vpop.xlane.xlu0 %880
    %882 = vadd.xlane.f32.xlu0 %v856
    %v883 = vpop.xlane.xlu0 %882
    %884 = vadd.xlane.f32.xlu0 %v857
    %v885 = vpop.xlane.xlu0 %884
    %886 = vadd.xlane.f32.xlu0 %v858
    %v887 = vpop.xlane.xlu0 %886
    %888 = vadd.xlane.f32.xlu0 %v859
    %v889 = vpop.xlane.xlu0 %888
    %890 = vadd.xlane.f32.xlu0 %v860
    %v891 = vpop.xlane.xlu0 %890
    %892 = vadd.xlane.f32.xlu0 %v861
    %v893 = vpop.xlane.xlu0 %892
    %v894 = vadd.f32 %v830, %v863
    %v895 = vadd.f32 %v831, %v865
    %v896 = vadd.f32 %v832, %v867
    %v897 = vadd.f32 %v833, %v869
    %v898 = vadd.f32 %v834, %v871
    %v899 = vadd.f32 %v835, %v873
    %v900 = vadd.f32 %v836, %v875
    %v901 = vadd.f32 %v837, %v877
    %v902 = vadd.f32 %v838, %v879
    %v903 = vadd.f32 %v839, %v881
    %v904 = vadd.f32 %v840, %v883
    %v905 = vadd.f32 %v841, %v885
    %v906 = vadd.f32 %v842, %v887
    %v907 = vadd.f32 %v843, %v889
    %v908 = vadd.f32 %v844, %v891
    %v909 = vadd.f32 %v845, %v893
    %910 = vst.msk [vmem:[#allocation4] sm:$0xff] %vm813, %v894
    %911 = vst.msk [vmem:[#allocation4 + $0x8] sm:$0xff] %vm813, %v895
    %912 = vst.msk [vmem:[#allocation4 + $0x10] sm:$0xff] %vm813, %v896
    %913 = vst.msk [vmem:[#allocation4 + $0x18] sm:$0xff] %vm813, %v897
    %914 = vst.msk [vmem:[#allocation4 + $0x20] sm:$0xff] %vm813, %v898
    %915 = vst.msk [vmem:[#allocation4 + $0x28] sm:$0xff] %vm813, %v899
    %916 = vst.msk [vmem:[#allocation4 + $0x30] sm:$0xff] %vm813, %v900
    %917 = vst.msk [vmem:[#allocation4 + $0x38] sm:$0xff] %vm813, %v901
    %918 = vst.msk [vmem:[#allocation4 + $0x40] sm:$0xff] %vm813, %v902
    %919 = vst.msk [vmem:[#allocation4 + $0x48] sm:$0xff] %vm813, %v903
    %920 = vst.msk [vmem:[#allocation4 + $0x50] sm:$0xff] %vm813, %v904
    %921 = vst.msk [vmem:[#allocation4 + $0x58] sm:$0xff] %vm813, %v905
    %922 = vst.msk [vmem:[#allocation4 + $0x60] sm:$0xff] %vm813, %v906
    %923 = vst.msk [vmem:[#allocation4 + $0x68] sm:$0xff] %vm813, %v907
    %924 = vst.msk [vmem:[#allocation4 + $0x70] sm:$0xff] %vm813, %v908
    %925 = vst.msk [vmem:[#allocation4 + $0x78] sm:$0xff] %vm813, %v909
    %v926 = vld [vmem:[#allocation5] sm:$0xff]
    %v927 = vld [vmem:[#allocation5 + $0x8] sm:$0xff]
    %v928 = vld [vmem:[#allocation5 + $0x10] sm:$0xff]
    %v929 = vld [vmem:[#allocation5 + $0x18] sm:$0xff]
    %v930 = vld [vmem:[#allocation5 + $0x20] sm:$0xff]
    %v931 = vld [vmem:[#allocation5 + $0x28] sm:$0xff]
    %v932 = vld [vmem:[#allocation5 + $0x30] sm:$0xff]
    %v933 = vld [vmem:[#allocation5 + $0x38] sm:$0xff]
    %v934 = vld [vmem:[#allocation5 + $0x40] sm:$0xff]
    %v935 = vld [vmem:[#allocation5 + $0x48] sm:$0xff]
    %v936 = vld [vmem:[#allocation5 + $0x50] sm:$0xff]
    %v937 = vld [vmem:[#allocation5 + $0x58] sm:$0xff]
    %v938 = vld [vmem:[#allocation5 + $0x60] sm:$0xff]
    %v939 = vld [vmem:[#allocation5 + $0x68] sm:$0xff]
    %v940 = vld [vmem:[#allocation5 + $0x70] sm:$0xff]
    %v941 = vld [vmem:[#allocation5 + $0x78] sm:$0xff]
    %v942 = vsel %vm669, 1, 0
    %v943 = vsel %vm670, 1, 0
    %v944 = vsel %vm671, 1, 0
    %v945 = vsel %vm672, 1, 0
    %v946 = vsel %vm673, 1, 0
    %v947 = vsel %vm674, 1, 0
    %v948 = vsel %vm675, 1, 0
    %v949 = vsel %vm676, 1, 0
    %v950 = vsel %vm677, 1, 0
    %v951 = vsel %vm678, 1, 0
    %v952 = vsel %vm679, 1, 0
    %v953 = vsel %vm680, 1, 0
    %v954 = vsel %vm681, 1, 0
    %v955 = vsel %vm682, 1, 0
    %v956 = vsel %vm683, 1, 0
    %v957 = vsel %vm684, 1, 0
    %v958 = vcvt.s32.f32 %v942
    %v959 = vcvt.s32.f32 %v943
    %v960 = vcvt.s32.f32 %v944
    %v961 = vcvt.s32.f32 %v945
    %v962 = vcvt.s32.f32 %v946
    %v963 = vcvt.s32.f32 %v947
    %v964 = vcvt.s32.f32 %v948
    %v965 = vcvt.s32.f32 %v949
    %v966 = vcvt.s32.f32 %v950
    %v967 = vcvt.s32.f32 %v951
    %v968 = vcvt.s32.f32 %v952
    %v969 = vcvt.s32.f32 %v953
    %v970 = vcvt.s32.f32 %v954
    %v971 = vcvt.s32.f32 %v955
    %v972 = vcvt.s32.f32 %v956
    %v973 = vcvt.s32.f32 %v957
    %974 = vadd.xlane.f32.xlu0 %v958
    %v975 = vpop.xlane.xlu0 %974
    %976 = vadd.xlane.f32.xlu0 %v959
    %v977 = vpop.xlane.xlu0 %976
    %978 = vadd.xlane.f32.xlu0 %v960
    %v979 = vpop.xlane.xlu0 %978
    %980 = vadd.xlane.f32.xlu0 %v961
    %v981 = vpop.xlane.xlu0 %980
    %982 = vadd.xlane.f32.xlu0 %v962
    %v983 = vpop.xlane.xlu0 %982
    %984 = vadd.xlane.f32.xlu0 %v963
    %v985 = vpop.xlane.xlu0 %984
    %986 = vadd.xlane.f32.xlu0 %v964
    %v987 = vpop.xlane.xlu0 %986
    %988 = vadd.xlane.f32.xlu0 %v965
    %v989 = vpop.xlane.xlu0 %988
    %990 = vadd.xlane.f32.xlu0 %v966
    %v991 = vpop.xlane.xlu0 %990
    %992 = vadd.xlane.f32.xlu0 %v967
    %v993 = vpop.xlane.xlu0 %992
    %994 = vadd.xlane.f32.xlu0 %v968
    %v995 = vpop.xlane.xlu0 %994
    %996 = vadd.xlane.f32.xlu0 %v969
    %v997 = vpop.xlane.xlu0 %996
    %998 = vadd.xlane.f32.xlu0 %v970
    %v999 = vpop.xlane.xlu0 %998
    %1000 = vadd.xlane.f32.xlu0 %v971
    %v1001 = vpop.xlane.xlu0 %1000
    %1002 = vadd.xlane.f32.xlu0 %v972
    %v1003 = vpop.xlane.xlu0 %1002
    %1004 = vadd.xlane.f32.xlu0 %v973
    %v1005 = vpop.xlane.xlu0 %1004
    %v1006 = vadd.f32 %v926, %v975
    %v1007 = vadd.f32 %v927, %v977
    %v1008 = vadd.f32 %v928, %v979
    %v1009 = vadd.f32 %v929, %v981
    %v1010 = vadd.f32 %v930, %v983
    %v1011 = vadd.f32 %v931, %v985
    %v1012 = vadd.f32 %v932, %v987
    %v1013 = vadd.f32 %v933, %v989
    %v1014 = vadd.f32 %v934, %v991
    %v1015 = vadd.f32 %v935, %v993
    %v1016 = vadd.f32 %v936, %v995
    %v1017 = vadd.f32 %v937, %v997
    %v1018 = vadd.f32 %v938, %v999
    %v1019 = vadd.f32 %v939, %v1001
    %v1020 = vadd.f32 %v940, %v1003
    %v1021 = vadd.f32 %v941, %v1005
    %1022 = vst.msk [vmem:[#allocation5] sm:$0xff] %vm813, %v1006
    %1023 = vst.msk [vmem:[#allocation5 + $0x8] sm:$0xff] %vm813, %v1007
    %1024 = vst.msk [vmem:[#allocation5 + $0x10] sm:$0xff] %vm813, %v1008
    %1025 = vst.msk [vmem:[#allocation5 + $0x18] sm:$0xff] %vm813, %v1009
    %1026 = vst.msk [vmem:[#allocation5 + $0x20] sm:$0xff] %vm813, %v1010
    %1027 = vst.msk [vmem:[#allocation5 + $0x28] sm:$0xff] %vm813, %v1011
    %1028 = vst.msk [vmem:[#allocation5 + $0x30] sm:$0xff] %vm813, %v1012
    %1029 = vst.msk [vmem:[#allocation5 + $0x38] sm:$0xff] %vm813, %v1013
    %1030 = vst.msk [vmem:[#allocation5 + $0x40] sm:$0xff] %vm813, %v1014
    %1031 = vst.msk [vmem:[#allocation5 + $0x48] sm:$0xff] %vm813, %v1015
    %1032 = vst.msk [vmem:[#allocation5 + $0x50] sm:$0xff] %vm813, %v1016
    %1033 = vst.msk [vmem:[#allocation5 + $0x58] sm:$0xff] %vm813, %v1017
    %1034 = vst.msk [vmem:[#allocation5 + $0x60] sm:$0xff] %vm813, %v1018
    %1035 = vst.msk [vmem:[#allocation5 + $0x68] sm:$0xff] %vm813, %v1019
    %1036 = vst.msk [vmem:[#allocation5 + $0x70] sm:$0xff] %vm813, %v1020
    %1037 = vst.msk [vmem:[#allocation5 + $0x78] sm:$0xff] %vm813, %v1021
    %1038 = vst.msk [vmem:[#allocation2] sm:$0xff] %vm813, %v455
    %1039 = vst.msk [vmem:[#allocation2 + $0x8] sm:$0xff] %vm813, %v456
    %1040 = vst.msk [vmem:[#allocation2 + $0x10] sm:$0xff] %vm813, %v457
    %1041 = vst.msk [vmem:[#allocation2 + $0x18] sm:$0xff] %vm813, %v458
    %1042 = vst.msk [vmem:[#allocation2 + $0x20] sm:$0xff] %vm813, %v459
    %1043 = vst.msk [vmem:[#allocation2 + $0x28] sm:$0xff] %vm813, %v460
    %1044 = vst.msk [vmem:[#allocation2 + $0x30] sm:$0xff] %vm813, %v461
    %1045 = vst.msk [vmem:[#allocation2 + $0x38] sm:$0xff] %vm813, %v462
    %1046 = vst.msk [vmem:[#allocation2 + $0x40] sm:$0xff] %vm813, %v463
    %1047 = vst.msk [vmem:[#allocation2 + $0x48] sm:$0xff] %vm813, %v464
    %1048 = vst.msk [vmem:[#allocation2 + $0x50] sm:$0xff] %vm813, %v465
    %1049 = vst.msk [vmem:[#allocation2 + $0x58] sm:$0xff] %vm813, %v466
    %1050 = vst.msk [vmem:[#allocation2 + $0x60] sm:$0xff] %vm813, %v467
    %1051 = vst.msk [vmem:[#allocation2 + $0x68] sm:$0xff] %vm813, %v468
    %1052 = vst.msk [vmem:[#allocation2 + $0x70] sm:$0xff] %vm813, %v469
    %1053 = vst.msk [vmem:[#allocation2 + $0x78] sm:$0xff] %vm813, %v470
  $region25: #{tpu_custom_call.1} parent=0 // pred_fallthru
    _
  %p1054 = pneg %p404
  // Predicated region
  $region26: #{tpu_custom_call.1} parent=0 // pred_check
    _
  $region27: #{tpu_custom_call.1} parent=0 // pred_check_branch
    %1056 = sbr.rel (%p404) target = $region29
  $region28: #{tpu_custom_call.1} parent=0 // pred_region
    %v1057 = vld [vmem:[#allocation2] sm:$0xff]
    %v1058 = vld [vmem:[#allocation2 + $0x8] sm:$0xff]
    %v1059 = vld [vmem:[#allocation2 + $0x10] sm:$0xff]
    %v1060 = vld [vmem:[#allocation2 + $0x18] sm:$0xff]
    %v1061 = vld [vmem:[#allocation2 + $0x20] sm:$0xff]
    %v1062 = vld [vmem:[#allocation2 + $0x28] sm:$0xff]
    %v1063 = vld [vmem:[#allocation2 + $0x30] sm:$0xff]
    %v1064 = vld [vmem:[#allocation2 + $0x38] sm:$0xff]
    %v1065 = vld [vmem:[#allocation2 + $0x40] sm:$0xff]
    %v1066 = vld [vmem:[#allocation2 + $0x48] sm:$0xff]
    %v1067 = vld [vmem:[#allocation2 + $0x50] sm:$0xff]
    %v1068 = vld [vmem:[#allocation2 + $0x58] sm:$0xff]
    %v1069 = vld [vmem:[#allocation2 + $0x60] sm:$0xff]
    %v1070 = vld [vmem:[#allocation2 + $0x68] sm:$0xff]
    %v1071 = vld [vmem:[#allocation2 + $0x70] sm:$0xff]
    %v1072 = vld [vmem:[#allocation2 + $0x78] sm:$0xff]
    %1073 = vmax.xlane.f32.xlu0 %v267
    %v1074 = vpop.xlane.xlu0 %1073
    %1075 = vmax.xlane.f32.xlu0 %v270
    %v1076 = vpop.xlane.xlu0 %1075
    %1077 = vmax.xlane.f32.xlu0 %v275
    %v1078 = vpop.xlane.xlu0 %1077
    %1079 = vmax.xlane.f32.xlu0 %v278
    %v1080 = vpop.xlane.xlu0 %1079
    %1081 = vmax.xlane.f32.xlu0 %v283
    %v1082 = vpop.xlane.xlu0 %1081
    %1083 = vmax.xlane.f32.xlu0 %v286
    %v1084 = vpop.xlane.xlu0 %1083
    %1085 = vmax.xlane.f32.xlu0 %v291
    %v1086 = vpop.xlane.xlu0 %1085
    %1087 = vmax.xlane.f32.xlu0 %v294
    %v1088 = vpop.xlane.xlu0 %1087
    %1089 = vmax.xlane.f32.xlu0 %v299
    %v1090 = vpop.xlane.xlu0 %1089
    %1091 = vmax.xlane.f32.xlu0 %v302
    %v1092 = vpop.xlane.xlu0 %1091
    %1093 = vmax.xlane.f32.xlu0 %v307
    %v1094 = vpop.xlane.xlu0 %1093
    %1095 = vmax.xlane.f32.xlu0 %v310
    %v1096 = vpop.xlane.xlu0 %1095
    %1097 = vmax.xlane.f32.xlu0 %v315
    %v1098 = vpop.xlane.xlu0 %1097
    %1099 = vmax.xlane.f32.xlu0 %v318
    %v1100 = vpop.xlane.xlu0 %1099
    %1101 = vmax.xlane.f32.xlu0 %v323
    %v1102 = vpop.xlane.xlu0 %1101
    %1103 = vmax.xlane.f32.xlu0 %v326
    %v1104 = vpop.xlane.xlu0 %1103
    %v1105 = vmax.f32 %v1057, %v1074
    %v1106 = vmax.f32 %v1058, %v1076
    %v1107 = vmax.f32 %v1059, %v1078
    %v1108 = vmax.f32 %v1060, %v1080
    %v1109 = vmax.f32 %v1061, %v1082
    %v1110 = vmax.f32 %v1062, %v1084
    %v1111 = vmax.f32 %v1063, %v1086
    %v1112 = vmax.f32 %v1064, %v1088
    %v1113 = vmax.f32 %v1065, %v1090
    %v1114 = vmax.f32 %v1066, %v1092
    %v1115 = vmax.f32 %v1067, %v1094
    %v1116 = vmax.f32 %v1068, %v1096
    %v1117 = vmax.f32 %v1069, %v1098
    %v1118 = vmax.f32 %v1070, %v1100
    %v1119 = vmax.f32 %v1071, %v1102
    %v1120 = vmax.f32 %v1072, %v1104
    %1122 = vset.pattern.permute.xlu0 0
    %1123 = vperm.xlu0 %1122, %v1105
    %v1124 = vpop.permute.xlu0 %1123
    %1127 = vset.pattern.permute.xlu0 0
    %1128 = vperm.xlu0 %1127, %v1106
    %v1129 = vpop.permute.xlu0 %1128
    %1132 = vset.pattern.permute.xlu0 0
    %1133 = vperm.xlu0 %1132, %v1107
    %v1134 = vpop.permute.xlu0 %1133
    %1137 = vset.pattern.permute.xlu0 0
    %1138 = vperm.xlu0 %1137, %v1108
    %v1139 = vpop.permute.xlu0 %1138
    %1142 = vset.pattern.permute.xlu0 0
    %1143 = vperm.xlu0 %1142, %v1109
    %v1144 = vpop.permute.xlu0 %1143
    %1147 = vset.pattern.permute.xlu0 0
    %1148 = vperm.xlu0 %1147, %v1110
    %v1149 = vpop.permute.xlu0 %1148
    %1152 = vset.pattern.permute.xlu0 0
    %1153 = vperm.xlu0 %1152, %v1111
    %v1154 = vpop.permute.xlu0 %1153
    %1157 = vset.pattern.permute.xlu0 0
    %1158 = vperm.xlu0 %1157, %v1112
    %v1159 = vpop.permute.xlu0 %1158
    %1162 = vset.pattern.permute.xlu0 0
    %1163 = vperm.xlu0 %1162, %v1113
    %v1164 = vpop.permute.xlu0 %1163
    %1167 = vset.pattern.permute.xlu0 0
    %1168 = vperm.xlu0 %1167, %v1114
    %v1169 = vpop.permute.xlu0 %1168
    %1172 = vset.pattern.permute.xlu0 0
    %1173 = vperm.xlu0 %1172, %v1115
    %v1174 = vpop.permute.xlu0 %1173
    %1177 = vset.pattern.permute.xlu0 0
    %1178 = vperm.xlu0 %1177, %v1116
    %v1179 = vpop.permute.xlu0 %1178
    %1182 = vset.pattern.permute.xlu0 0
    %1183 = vperm.xlu0 %1182, %v1117
    %v1184 = vpop.permute.xlu0 %1183
    %1187 = vset.pattern.permute.xlu0 0
    %1188 = vperm.xlu0 %1187, %v1118
    %v1189 = vpop.permute.xlu0 %1188
    %1192 = vset.pattern.permute.xlu0 0
    %1193 = vperm.xlu0 %1192, %v1119
    %v1194 = vpop.permute.xlu0 %1193
    %1197 = vset.pattern.permute.xlu0 0
    %1198 = vperm.xlu0 %1197, %v1120
    %v1199 = vpop.permute.xlu0 %1198
    %v1201 = vsub.f32 %v267, %v1124
    %v1202 = vsub.f32 %v270, %v1129
    %v1203 = vsub.f32 %v275, %v1134
    %v1204 = vsub.f32 %v278, %v1139
    %v1205 = vsub.f32 %v283, %v1144
    %v1206 = vsub.f32 %v286, %v1149
    %v1207 = vsub.f32 %v291, %v1154
    %v1208 = vsub.f32 %v294, %v1159
    %v1209 = vsub.f32 %v299, %v1164
    %v1210 = vsub.f32 %v302, %v1169
    %v1211 = vsub.f32 %v307, %v1174
    %v1212 = vsub.f32 %v310, %v1179
    %v1213 = vsub.f32 %v315, %v1184
    %v1214 = vsub.f32 %v318, %v1189
    %v1215 = vsub.f32 %v323, %v1194
    %v1216 = vsub.f32 %v326, %v1199
    %v1217 = vmul.f32 %v1201, 1.442695
    %v1218 = vpow.pop %v1217
    %v1219 = vmul.f32 %v1202, 1.442695
    %v1220 = vpow.pop %v1219
    %v1221 = vmul.f32 %v1203, 1.442695
    %v1222 = vpow.pop %v1221
    %v1223 = vmul.f32 %v1204, 1.442695
    %v1224 = vpow.pop %v1223
    %v1225 = vmul.f32 %v1205, 1.442695
    %v1226 = vpow.pop %v1225
    %v1227 = vmul.f32 %v1206, 1.442695
    %v1228 = vpow.pop %v1227
    %v1229 = vmul.f32 %v1207, 1.442695
    %v1230 = vpow.pop %v1229
    %v1231 = vmul.f32 %v1208, 1.442695
    %v1232 = vpow.pop %v1231
    %v1233 = vmul.f32 %v1209, 1.442695
    %v1234 = vpow.pop %v1233
    %v1235 = vmul.f32 %v1210, 1.442695
    %v1236 = vpow.pop %v1235
    %v1237 = vmul.f32 %v1211, 1.442695
    %v1238 = vpow.pop %v1237
    %v1239 = vmul.f32 %v1212, 1.442695
    %v1240 = vpow.pop %v1239
    %v1241 = vmul.f32 %v1213, 1.442695
    %v1242 = vpow.pop %v1241
    %v1243 = vmul.f32 %v1214, 1.442695
    %v1244 = vpow.pop %v1243
    %v1245 = vmul.f32 %v1215, 1.442695
    %v1246 = vpow.pop %v1245
    %v1247 = vmul.f32 %v1216, 1.442695
    %v1248 = vpow.pop %v1247
    %v1249 = vld [vmem:[#allocation3] sm:$0xff]
    %v1250 = vld [vmem:[#allocation3 + $0x8] sm:$0xff]
    %v1251 = vld [vmem:[#allocation3 + $0x10] sm:$0xff]
    %v1252 = vld [vmem:[#allocation3 + $0x18] sm:$0xff]
    %v1253 = vld [vmem:[#allocation3 + $0x20] sm:$0xff]
    %v1254 = vld [vmem:[#allocation3 + $0x28] sm:$0xff]
    %v1255 = vld [vmem:[#allocation3 + $0x30] sm:$0xff]
    %v1256 = vld [vmem:[#allocation3 + $0x38] sm:$0xff]
    %v1257 = vld [vmem:[#allocation3 + $0x40] sm:$0xff]
    %v1258 = vld [vmem:[#allocation3 + $0x48] sm:$0xff]
    %v1259 = vld [vmem:[#allocation3 + $0x50] sm:$0xff]
    %v1260 = vld [vmem:[#allocation3 + $0x58] sm:$0xff]
    %v1261 = vld [vmem:[#allocation3 + $0x60] sm:$0xff]
    %v1262 = vld [vmem:[#allocation3 + $0x68] sm:$0xff]
    %v1263 = vld [vmem:[#allocation3 + $0x70] sm:$0xff]
    %v1264 = vld [vmem:[#allocation3 + $0x78] sm:$0xff]
    %v1265 = vsub.f32 %v1057, %v1105
    %v1266 = vsub.f32 %v1058, %v1106
    %v1267 = vsub.f32 %v1059, %v1107
    %v1268 = vsub.f32 %v1060, %v1108
    %v1269 = vsub.f32 %v1061, %v1109
    %v1270 = vsub.f32 %v1062, %v1110
    %v1271 = vsub.f32 %v1063, %v1111
    %v1272 = vsub.f32 %v1064, %v1112
    %v1273 = vsub.f32 %v1065, %v1113
    %v1274 = vsub.f32 %v1066, %v1114
    %v1275 = vsub.f32 %v1067, %v1115
    %v1276 = vsub.f32 %v1068, %v1116
    %v1277 = vsub.f32 %v1069, %v1117
    %v1278 = vsub.f32 %v1070, %v1118
    %v1279 = vsub.f32 %v1071, %v1119
    %v1280 = vsub.f32 %v1072, %v1120
    %v1281 = vmul.f32 %v1265, 1.442695
    %v1282 = vpow.pop %v1281
    %v1283 = vmul.f32 %v1266, 1.442695
    %v1284 = vpow.pop %v1283
    %v1285 = vmul.f32 %v1267, 1.442695
    %v1286 = vpow.pop %v1285
    %v1287 = vmul.f32 %v1268, 1.442695
    %v1288 = vpow.pop %v1287
    %v1289 = vmul.f32 %v1269, 1.442695
    %v1290 = vpow.pop %v1289
    %v1291 = vmul.f32 %v1270, 1.442695
    %v1292 = vpow.pop %v1291
    %v1293 = vmul.f32 %v1271, 1.442695
    %v1294 = vpow.pop %v1293
    %v1295 = vmul.f32 %v1272, 1.442695
    %v1296 = vpow.pop %v1295
    %v1297 = vmul.f32 %v1273, 1.442695
    %v1298 = vpow.pop %v1297
    %v1299 = vmul.f32 %v1274, 1.442695
    %v1300 = vpow.pop %v1299
    %v1301 = vmul.f32 %v1275, 1.442695
    %v1302 = vpow.pop %v1301
    %v1303 = vmul.f32 %v1276, 1.442695
    %v1304 = vpow.pop %v1303
    %v1305 = vmul.f32 %v1277, 1.442695
    %v1306 = vpow.pop %v1305
    %v1307 = vmul.f32 %v1278, 1.442695
    %v1308 = vpow.pop %v1307
    %v1309 = vmul.f32 %v1279, 1.442695
    %v1310 = vpow.pop %v1309
    %v1311 = vmul.f32 %v1280, 1.442695
    %v1312 = vpow.pop %v1311
    %v1313 = vmul.f32 %v1249, %v1282
    %v1314 = vmul.f32 %v1250, %v1284
    %v1315 = vmul.f32 %v1251, %v1286
    %v1316 = vmul.f32 %v1252, %v1288
    %v1317 = vmul.f32 %v1253, %v1290
    %v1318 = vmul.f32 %v1254, %v1292
    %v1319 = vmul.f32 %v1255, %v1294
    %v1320 = vmul.f32 %v1256, %v1296
    %v1321 = vmul.f32 %v1257, %v1298
    %v1322 = vmul.f32 %v1258, %v1300
    %v1323 = vmul.f32 %v1259, %v1302
    %v1324 = vmul.f32 %v1260, %v1304
    %v1325 = vmul.f32 %v1261, %v1306
    %v1326 = vmul.f32 %v1262, %v1308
    %v1327 = vmul.f32 %v1263, %v1310
    %v1328 = vmul.f32 %v1264, %v1312
    %1329 = vadd.xlane.f32.xlu0 %v1218
    %v1330 = vpop.xlane.xlu0 %1329
    %1331 = vadd.xlane.f32.xlu0 %v1220
    %v1332 = vpop.xlane.xlu0 %1331
    %1333 = vadd.xlane.f32.xlu0 %v1222
    %v1334 = vpop.xlane.xlu0 %1333
    %1335 = vadd.xlane.f32.xlu0 %v1224
    %v1336 = vpop.xlane.xlu0 %1335
    %1337 = vadd.xlane.f32.xlu0 %v1226
    %v1338 = vpop.xlane.xlu0 %1337
    %1339 = vadd.xlane.f32.xlu0 %v1228
    %v1340 = vpop.xlane.xlu0 %1339
    %1341 = vadd.xlane.f32.xlu0 %v1230
    %v1342 = vpop.xlane.xlu0 %1341
    %1343 = vadd.xlane.f32.xlu0 %v1232
    %v1344 = vpop.xlane.xlu0 %1343
    %1345 = vadd.xlane.f32.xlu0 %v1234
    %v1346 = vpop.xlane.xlu0 %1345
    %1347 = vadd.xlane.f32.xlu0 %v1236
    %v1348 = vpop.xlane.xlu0 %1347
    %1349 = vadd.xlane.f32.xlu0 %v1238
    %v1350 = vpop.xlane.xlu0 %1349
    %1351 = vadd.xlane.f32.xlu0 %v1240
    %v1352 = vpop.xlane.xlu0 %1351
    %1353 = vadd.xlane.f32.xlu0 %v1242
    %v1354 = vpop.xlane.xlu0 %1353
    %1355 = vadd.xlane.f32.xlu0 %v1244
    %v1356 = vpop.xlane.xlu0 %1355
    %1357 = vadd.xlane.f32.xlu0 %v1246
    %v1358 = vpop.xlane.xlu0 %1357
    %1359 = vadd.xlane.f32.xlu0 %v1248
    %v1360 = vpop.xlane.xlu0 %1359
    %v1361 = vadd.f32 %v1313, %v1330
    %v1362 = vadd.f32 %v1314, %v1332
    %v1363 = vadd.f32 %v1315, %v1334
    %v1364 = vadd.f32 %v1316, %v1336
    %v1365 = vadd.f32 %v1317, %v1338
    %v1366 = vadd.f32 %v1318, %v1340
    %v1367 = vadd.f32 %v1319, %v1342
    %v1368 = vadd.f32 %v1320, %v1344
    %v1369 = vadd.f32 %v1321, %v1346
    %v1370 = vadd.f32 %v1322, %v1348
    %v1371 = vadd.f32 %v1323, %v1350
    %v1372 = vadd.f32 %v1324, %v1352
    %v1373 = vadd.f32 %v1325, %v1354
    %v1374 = vadd.f32 %v1326, %v1356
    %v1375 = vadd.f32 %v1327, %v1358
    %v1376 = vadd.f32 %v1328, %v1360
    %vm1377 = vcmask 7168
    %1378 = vst.msk [vmem:[#allocation3] sm:$0xff] %vm1377, %v1361
    %1379 = vst.msk [vmem:[#allocation3 + $0x8] sm:$0xff] %vm1377, %v1362
    %1380 = vst.msk [vmem:[#allocation3 + $0x10] sm:$0xff] %vm1377, %v1363
    %1381 = vst.msk [vmem:[#allocation3 + $0x18] sm:$0xff] %vm1377, %v1364
    %1382 = vst.msk [vmem:[#allocation3 + $0x20] sm:$0xff] %vm1377, %v1365
    %1383 = vst.msk [vmem:[#allocation3 + $0x28] sm:$0xff] %vm1377, %v1366
    %1384 = vst.msk [vmem:[#allocation3 + $0x30] sm:$0xff] %vm1377, %v1367
    %1385 = vst.msk [vmem:[#allocation3 + $0x38] sm:$0xff] %vm1377, %v1368
    %1386 = vst.msk [vmem:[#allocation3 + $0x40] sm:$0xff] %vm1377, %v1369
    %1387 = vst.msk [vmem:[#allocation3 + $0x48] sm:$0xff] %vm1377, %v1370
    %1388 = vst.msk [vmem:[#allocation3 + $0x50] sm:$0xff] %vm1377, %v1371
    %1389 = vst.msk [vmem:[#allocation3 + $0x58] sm:$0xff] %vm1377, %v1372
    %1390 = vst.msk [vmem:[#allocation3 + $0x60] sm:$0xff] %vm1377, %v1373
    %1391 = vst.msk [vmem:[#allocation3 + $0x68] sm:$0xff] %vm1377, %v1374
    %1392 = vst.msk [vmem:[#allocation3 + $0x70] sm:$0xff] %vm1377, %v1375
    %1393 = vst.msk [vmem:[#allocation3 + $0x78] sm:$0xff] %vm1377, %v1376
    %v1394 = vld [vmem:[#allocation4] sm:$0xff]
    %v1395 = vld [vmem:[#allocation4 + $0x8] sm:$0xff]
    %v1396 = vld [vmem:[#allocation4 + $0x10] sm:$0xff]
    %v1397 = vld [vmem:[#allocation4 + $0x18] sm:$0xff]
    %v1398 = vld [vmem:[#allocation4 + $0x20] sm:$0xff]
    %v1399 = vld [vmem:[#allocation4 + $0x28] sm:$0xff]
    %v1400 = vld [vmem:[#allocation4 + $0x30] sm:$0xff]
    %v1401 = vld [vmem:[#allocation4 + $0x38] sm:$0xff]
    %v1402 = vld [vmem:[#allocation4 + $0x40] sm:$0xff]
    %v1403 = vld [vmem:[#allocation4 + $0x48] sm:$0xff]
    %v1404 = vld [vmem:[#allocation4 + $0x50] sm:$0xff]
    %v1405 = vld [vmem:[#allocation4 + $0x58] sm:$0xff]
    %v1406 = vld [vmem:[#allocation4 + $0x60] sm:$0xff]
    %v1407 = vld [vmem:[#allocation4 + $0x68] sm:$0xff]
    %v1408 = vld [vmem:[#allocation4 + $0x70] sm:$0xff]
    %v1409 = vld [vmem:[#allocation4 + $0x78] sm:$0xff]
    %v1410 = vsel %vm381, %v267, 0.0
    %v1411 = vsel %vm382, %v270, 0.0
    %v1412 = vsel %vm383, %v275, 0.0
    %v1413 = vsel %vm384, %v278, 0.0
    %v1414 = vsel %vm385, %v283, 0.0
    %v1415 = vsel %vm386, %v286, 0.0
    %v1416 = vsel %vm387, %v291, 0.0
    %v1417 = vsel %vm388, %v294, 0.0
    %v1418 = vsel %vm389, %v299, 0.0
    %v1419 = vsel %vm390, %v302, 0.0
    %v1420 = vsel %vm391, %v307, 0.0
    %v1421 = vsel %vm392, %v310, 0.0
    %v1422 = vsel %vm393, %v315, 0.0
    %v1423 = vsel %vm394, %v318, 0.0
    %v1424 = vsel %vm395, %v323, 0.0
    %v1425 = vsel %vm396, %v326, 0.0
    %1426 = vadd.xlane.f32.xlu0 %v1410
    %v1427 = vpop.xlane.xlu0 %1426
    %1428 = vadd.xlane.f32.xlu0 %v1411
    %v1429 = vpop.xlane.xlu0 %1428
    %1430 = vadd.xlane.f32.xlu0 %v1412
    %v1431 = vpop.xlane.xlu0 %1430
    %1432 = vadd.xlane.f32.xlu0 %v1413
    %v1433 = vpop.xlane.xlu0 %1432
    %1434 = vadd.xlane.f32.xlu0 %v1414
    %v1435 = vpop.xlane.xlu0 %1434
    %1436 = vadd.xlane.f32.xlu0 %v1415
    %v1437 = vpop.xlane.xlu0 %1436
    %1438 = vadd.xlane.f32.xlu0 %v1416
    %v1439 = vpop.xlane.xlu0 %1438
    %1440 = vadd.xlane.f32.xlu0 %v1417
    %v1441 = vpop.xlane.xlu0 %1440
    %1442 = vadd.xlane.f32.xlu0 %v1418
    %v1443 = vpop.xlane.xlu0 %1442
    %1444 = vadd.xlane.f32.xlu0 %v1419
    %v1445 = vpop.xlane.xlu0 %1444
    %1446 = vadd.xlane.f32.xlu0 %v1420
    %v1447 = vpop.xlane.xlu0 %1446
    %1448 = vadd.xlane.f32.xlu0 %v1421
    %v1449 = vpop.xlane.xlu0 %1448
    %1450 = vadd.xlane.f32.xlu0 %v1422
    %v1451 = vpop.xlane.xlu0 %1450
    %1452 = vadd.xlane.f32.xlu0 %v1423
    %v1453 = vpop.xlane.xlu0 %1452
    %1454 = vadd.xlane.f32.xlu0 %v1424
    %v1455 = vpop.xlane.xlu0 %1454
    %1456 = vadd.xlane.f32.xlu0 %v1425
    %v1457 = vpop.xlane.xlu0 %1456
    %v1458 = vadd.f32 %v1394, %v1427
    %v1459 = vadd.f32 %v1395, %v1429
    %v1460 = vadd.f32 %v1396, %v1431
    %v1461 = vadd.f32 %v1397, %v1433
    %v1462 = vadd.f32 %v1398, %v1435
    %v1463 = vadd.f32 %v1399, %v1437
    %v1464 = vadd.f32 %v1400, %v1439
    %v1465 = vadd.f32 %v1401, %v1441
    %v1466 = vadd.f32 %v1402, %v1443
    %v1467 = vadd.f32 %v1403, %v1445
    %v1468 = vadd.f32 %v1404, %v1447
    %v1469 = vadd.f32 %v1405, %v1449
    %v1470 = vadd.f32 %v1406, %v1451
    %v1471 = vadd.f32 %v1407, %v1453
    %v1472 = vadd.f32 %v1408, %v1455
    %v1473 = vadd.f32 %v1409, %v1457
    %1474 = vst.msk [vmem:[#allocation4] sm:$0xff] %vm1377, %v1458
    %1475 = vst.msk [vmem:[#allocation4 + $0x8] sm:$0xff] %vm1377, %v1459
    %1476 = vst.msk [vmem:[#allocation4 + $0x10] sm:$0xff] %vm1377, %v1460
    %1477 = vst.msk [vmem:[#allocation4 + $0x18] sm:$0xff] %vm1377, %v1461
    %1478 = vst.msk [vmem:[#allocation4 + $0x20] sm:$0xff] %vm1377, %v1462
    %1479 = vst.msk [vmem:[#allocation4 + $0x28] sm:$0xff] %vm1377, %v1463
    %1480 = vst.msk [vmem:[#allocation4 + $0x30] sm:$0xff] %vm1377, %v1464
    %1481 = vst.msk [vmem:[#allocation4 + $0x38] sm:$0xff] %vm1377, %v1465
    %1482 = vst.msk [vmem:[#allocation4 + $0x40] sm:$0xff] %vm1377, %v1466
    %1483 = vst.msk [vmem:[#allocation4 + $0x48] sm:$0xff] %vm1377, %v1467
    %1484 = vst.msk [vmem:[#allocation4 + $0x50] sm:$0xff] %vm1377, %v1468
    %1485 = vst.msk [vmem:[#allocation4 + $0x58] sm:$0xff] %vm1377, %v1469
    %1486 = vst.msk [vmem:[#allocation4 + $0x60] sm:$0xff] %vm1377, %v1470
    %1487 = vst.msk [vmem:[#allocation4 + $0x68] sm:$0xff] %vm1377, %v1471
    %1488 = vst.msk [vmem:[#allocation4 + $0x70] sm:$0xff] %vm1377, %v1472
    %1489 = vst.msk [vmem:[#allocation4 + $0x78] sm:$0xff] %vm1377, %v1473
    %v1490 = vld [vmem:[#allocation5] sm:$0xff]
    %v1491 = vld [vmem:[#allocation5 + $0x8] sm:$0xff]
    %v1492 = vld [vmem:[#allocation5 + $0x10] sm:$0xff]
    %v1493 = vld [vmem:[#allocation5 + $0x18] sm:$0xff]
    %v1494 = vld [vmem:[#allocation5 + $0x20] sm:$0xff]
    %v1495 = vld [vmem:[#allocation5 + $0x28] sm:$0xff]
    %v1496 = vld [vmem:[#allocation5 + $0x30] sm:$0xff]
    %v1497 = vld [vmem:[#allocation5 + $0x38] sm:$0xff]
    %v1498 = vld [vmem:[#allocation5 + $0x40] sm:$0xff]
    %v1499 = vld [vmem:[#allocation5 + $0x48] sm:$0xff]
    %v1500 = vld [vmem:[#allocation5 + $0x50] sm:$0xff]
    %v1501 = vld [vmem:[#allocation5 + $0x58] sm:$0xff]
    %v1502 = vld [vmem:[#allocation5 + $0x60] sm:$0xff]
    %v1503 = vld [vmem:[#allocation5 + $0x68] sm:$0xff]
    %v1504 = vld [vmem:[#allocation5 + $0x70] sm:$0xff]
    %v1505 = vld [vmem:[#allocation5 + $0x78] sm:$0xff]
    %v1506 = vsel %vm381, 1, 0
    %v1507 = vsel %vm382, 1, 0
    %v1508 = vsel %vm383, 1, 0
    %v1509 = vsel %vm384, 1, 0
    %v1510 = vsel %vm385, 1, 0
    %v1511 = vsel %vm386, 1, 0
    %v1512 = vsel %vm387, 1, 0
    %v1513 = vsel %vm388, 1, 0
    %v1514 = vsel %vm389, 1, 0
    %v1515 = vsel %vm390, 1, 0
    %v1516 = vsel %vm391, 1, 0
    %v1517 = vsel %vm392, 1, 0
    %v1518 = vsel %vm393, 1, 0
    %v1519 = vsel %vm394, 1, 0
    %v1520 = vsel %vm395, 1, 0
    %v1521 = vsel %vm396, 1, 0
    %v1522 = vcvt.s32.f32 %v1506
    %v1523 = vcvt.s32.f32 %v1507
    %v1524 = vcvt.s32.f32 %v1508
    %v1525 = vcvt.s32.f32 %v1509
    %v1526 = vcvt.s32.f32 %v1510
    %v1527 = vcvt.s32.f32 %v1511
    %v1528 = vcvt.s32.f32 %v1512
    %v1529 = vcvt.s32.f32 %v1513
    %v1530 = vcvt.s32.f32 %v1514
    %v1531 = vcvt.s32.f32 %v1515
    %v1532 = vcvt.s32.f32 %v1516
    %v1533 = vcvt.s32.f32 %v1517
    %v1534 = vcvt.s32.f32 %v1518
    %v1535 = vcvt.s32.f32 %v1519
    %v1536 = vcvt.s32.f32 %v1520
    %v1537 = vcvt.s32.f32 %v1521
    %1538 = vadd.xlane.f32.xlu0 %v1522
    %v1539 = vpop.xlane.xlu0 %1538
    %1540 = vadd.xlane.f32.xlu0 %v1523
    %v1541 = vpop.xlane.xlu0 %1540
    %1542 = vadd.xlane.f32.xlu0 %v1524
    %v1543 = vpop.xlane.xlu0 %1542
    %1544 = vadd.xlane.f32.xlu0 %v1525
    %v1545 = vpop.xlane.xlu0 %1544
    %1546 = vadd.xlane.f32.xlu0 %v1526
    %v1547 = vpop.xlane.xlu0 %1546
    %1548 = vadd.xlane.f32.xlu0 %v1527
    %v1549 = vpop.xlane.xlu0 %1548
    %1550 = vadd.xlane.f32.xlu0 %v1528
    %v1551 = vpop.xlane.xlu0 %1550
    %1552 = vadd.xlane.f32.xlu0 %v1529
    %v1553 = vpop.xlane.xlu0 %1552
    %1554 = vadd.xlane.f32.xlu0 %v1530
    %v1555 = vpop.xlane.xlu0 %1554
    %1556 = vadd.xlane.f32.xlu0 %v1531
    %v1557 = vpop.xlane.xlu0 %1556
    %1558 = vadd.xlane.f32.xlu0 %v1532
    %v1559 = vpop.xlane.xlu0 %1558
    %1560 = vadd.xlane.f32.xlu0 %v1533
    %v1561 = vpop.xlane.xlu0 %1560
    %1562 = vadd.xlane.f32.xlu0 %v1534
    %v1563 = vpop.xlane.xlu0 %1562
    %1564 = vadd.xlane.f32.xlu0 %v1535
    %v1565 = vpop.xlane.xlu0 %1564
    %1566 = vadd.xlane.f32.xlu0 %v1536
    %v1567 = vpop.xlane.xlu0 %1566
    %1568 = vadd.xlane.f32.xlu0 %v1537
    %v1569 = vpop.xlane.xlu0 %1568
    %v1570 = vadd.f32 %v1490, %v1539
    %v1571 = vadd.f32 %v1491, %v1541
    %v1572 = vadd.f32 %v1492, %v1543
    %v1573 = vadd.f32 %v1493, %v1545
    %v1574 = vadd.f32 %v1494, %v1547
    %v1575 = vadd.f32 %v1495, %v1549
    %v1576 = vadd.f32 %v1496, %v1551
    %v1577 = vadd.f32 %v1497, %v1553
    %v1578 = vadd.f32 %v1498, %v1555
    %v1579 = vadd.f32 %v1499, %v1557
    %v1580 = vadd.f32 %v1500, %v1559
    %v1581 = vadd.f32 %v1501, %v1561
    %v1582 = vadd.f32 %v1502, %v1563
    %v1583 = vadd.f32 %v1503, %v1565
    %v1584 = vadd.f32 %v1504, %v1567
    %v1585 = vadd.f32 %v1505, %v1569
    %1586 = vst.msk [vmem:[#allocation5] sm:$0xff] %vm1377, %v1570
    %1587 = vst.msk [vmem:[#allocation5 + $0x8] sm:$0xff] %vm1377, %v1571
    %1588 = vst.msk [vmem:[#allocation5 + $0x10] sm:$0xff] %vm1377, %v1572
    %1589 = vst.msk [vmem:[#allocation5 + $0x18] sm:$0xff] %vm1377, %v1573
    %1590 = vst.msk [vmem:[#allocation5 + $0x20] sm:$0xff] %vm1377, %v1574
    %1591 = vst.msk [vmem:[#allocation5 + $0x28] sm:$0xff] %vm1377, %v1575
    %1592 = vst.msk [vmem:[#allocation5 + $0x30] sm:$0xff] %vm1377, %v1576
    %1593 = vst.msk [vmem:[#allocation5 + $0x38] sm:$0xff] %vm1377, %v1577
    %1594 = vst.msk [vmem:[#allocation5 + $0x40] sm:$0xff] %vm1377, %v1578
    %1595 = vst.msk [vmem:[#allocation5 + $0x48] sm:$0xff] %vm1377, %v1579
    %1596 = vst.msk [vmem:[#allocation5 + $0x50] sm:$0xff] %vm1377, %v1580
    %1597 = vst.msk [vmem:[#allocation5 + $0x58] sm:$0xff] %vm1377, %v1581
    %1598 = vst.msk [vmem:[#allocation5 + $0x60] sm:$0xff] %vm1377, %v1582
    %1599 = vst.msk [vmem:[#allocation5 + $0x68] sm:$0xff] %vm1377, %v1583
    %1600 = vst.msk [vmem:[#allocation5 + $0x70] sm:$0xff] %vm1377, %v1584
    %1601 = vst.msk [vmem:[#allocation5 + $0x78] sm:$0xff] %vm1377, %v1585
    %1602 = vst.msk [vmem:[#allocation2] sm:$0xff] %vm1377, %v1105
    %1603 = vst.msk [vmem:[#allocation2 + $0x8] sm:$0xff] %vm1377, %v1106
    %1604 = vst.msk [vmem:[#allocation2 + $0x10] sm:$0xff] %vm1377, %v1107
    %1605 = vst.msk [vmem:[#allocation2 + $0x18] sm:$0xff] %vm1377, %v1108
    %1606 = vst.msk [vmem:[#allocation2 + $0x20] sm:$0xff] %vm1377, %v1109
    %1607 = vst.msk [vmem:[#allocation2 + $0x28] sm:$0xff] %vm1377, %v1110
    %1608 = vst.msk [vmem:[#allocation2 + $0x30] sm:$0xff] %vm1377, %v1111
    %1609 = vst.msk [vmem:[#allocation2 + $0x38] sm:$0xff] %vm1377, %v1112
    %1610 = vst.msk [vmem:[#allocation2 + $0x40] sm:$0xff] %vm1377, %v1113
    %1611 = vst.msk [vmem:[#allocation2 + $0x48] sm:$0xff] %vm1377, %v1114
    %1612 = vst.msk [vmem:[#allocation2 + $0x50] sm:$0xff] %vm1377, %v1115
    %1613 = vst.msk [vmem:[#allocation2 + $0x58] sm:$0xff] %vm1377, %v1116
    %1614 = vst.msk [vmem:[#allocation2 + $0x60] sm:$0xff] %vm1377, %v1117
    %1615 = vst.msk [vmem:[#allocation2 + $0x68] sm:$0xff] %vm1377, %v1118
    %1616 = vst.msk [vmem:[#allocation2 + $0x70] sm:$0xff] %vm1377, %v1119
    %1617 = vst.msk [vmem:[#allocation2 + $0x78] sm:$0xff] %vm1377, %v1120
  $region29: #{tpu_custom_call.1} parent=0 // pred_fallthru
    _
  // Predicated region
  $region30: #{tpu_custom_call.1} parent=0 // pred_check
    %p1618 = pneg %p18
  $region31: #{tpu_custom_call.1} parent=0 // pred_check_branch
    %1620 = sbr.rel (%p1618) target = $region33
  $region32: #{tpu_custom_call.1} parent=0 // pred_region
    %v1621 = vld [vmem:[#allocation2] sm:$0xff]
    %v1622 = vld [vmem:[#allocation2 + $0x8] sm:$0xff]
    %v1623 = vld [vmem:[#allocation2 + $0x10] sm:$0xff]
    %v1624 = vld [vmem:[#allocation2 + $0x18] sm:$0xff]
    %v1625 = vld [vmem:[#allocation2 + $0x20] sm:$0xff]
    %v1626 = vld [vmem:[#allocation2 + $0x28] sm:$0xff]
    %v1627 = vld [vmem:[#allocation2 + $0x30] sm:$0xff]
    %v1628 = vld [vmem:[#allocation2 + $0x38] sm:$0xff]
    %v1629 = vld [vmem:[#allocation2 + $0x40] sm:$0xff]
    %v1630 = vld [vmem:[#allocation2 + $0x48] sm:$0xff]
    %v1631 = vld [vmem:[#allocation2 + $0x50] sm:$0xff]
    %v1632 = vld [vmem:[#allocation2 + $0x58] sm:$0xff]
    %v1633 = vld [vmem:[#allocation2 + $0x60] sm:$0xff]
    %v1634 = vld [vmem:[#allocation2 + $0x68] sm:$0xff]
    %v1635 = vld [vmem:[#allocation2 + $0x70] sm:$0xff]
    %v1636 = vld [vmem:[#allocation2 + $0x78] sm:$0xff]
    %v1637 = vld [vmem:[#allocation3] sm:$0xff]
    %v1638 = vld [vmem:[#allocation3 + $0x8] sm:$0xff]
    %v1639 = vld [vmem:[#allocation3 + $0x10] sm:$0xff]
    %v1640 = vld [vmem:[#allocation3 + $0x18] sm:$0xff]
    %v1641 = vld [vmem:[#allocation3 + $0x20] sm:$0xff]
    %v1642 = vld [vmem:[#allocation3 + $0x28] sm:$0xff]
    %v1643 = vld [vmem:[#allocation3 + $0x30] sm:$0xff]
    %v1644 = vld [vmem:[#allocation3 + $0x38] sm:$0xff]
    %v1645 = vld [vmem:[#allocation3 + $0x40] sm:$0xff]
    %v1646 = vld [vmem:[#allocation3 + $0x48] sm:$0xff]
    %v1647 = vld [vmem:[#allocation3 + $0x50] sm:$0xff]
    %v1648 = vld [vmem:[#allocation3 + $0x58] sm:$0xff]
    %v1649 = vld [vmem:[#allocation3 + $0x60] sm:$0xff]
    %v1650 = vld [vmem:[#allocation3 + $0x68] sm:$0xff]
    %v1651 = vld [vmem:[#allocation3 + $0x70] sm:$0xff]
    %v1652 = vld [vmem:[#allocation3 + $0x78] sm:$0xff]
    %v1653 = vsub.f32 0.0, %v1621
    %v1654 = vsub.f32 0.0, %v1622
    %v1655 = vsub.f32 0.0, %v1623
    %v1656 = vsub.f32 0.0, %v1624
    %v1657 = vsub.f32 0.0, %v1625
    %v1658 = vsub.f32 0.0, %v1626
    %v1659 = vsub.f32 0.0, %v1627
    %v1660 = vsub.f32 0.0, %v1628
    %v1661 = vsub.f32 0.0, %v1629
    %v1662 = vsub.f32 0.0, %v1630
    %v1663 = vsub.f32 0.0, %v1631
    %v1664 = vsub.f32 0.0, %v1632
    %v1665 = vsub.f32 0.0, %v1633
    %v1666 = vsub.f32 0.0, %v1634
    %v1667 = vsub.f32 0.0, %v1635
    %v1668 = vsub.f32 0.0, %v1636
    %v1669 = vmul.f32 %v1653, 1.442695
    %v1670 = vpow.pop %v1669
    %v1671 = vmul.f32 %v1654, 1.442695
    %v1672 = vpow.pop %v1671
    %v1673 = vmul.f32 %v1655, 1.442695
    %v1674 = vpow.pop %v1673
    %v1675 = vmul.f32 %v1656, 1.442695
    %v1676 = vpow.pop %v1675
    %v1677 = vmul.f32 %v1657, 1.442695
    %v1678 = vpow.pop %v1677
    %v1679 = vmul.f32 %v1658, 1.442695
    %v1680 = vpow.pop %v1679
    %v1681 = vmul.f32 %v1659, 1.442695
    %v1682 = vpow.pop %v1681
    %v1683 = vmul.f32 %v1660, 1.442695
    %v1684 = vpow.pop %v1683
    %v1685 = vmul.f32 %v1661, 1.442695
    %v1686 = vpow.pop %v1685
    %v1687 = vmul.f32 %v1662, 1.442695
    %v1688 = vpow.pop %v1687
    %v1689 = vmul.f32 %v1663, 1.442695
    %v1690 = vpow.pop %v1689
    %v1691 = vmul.f32 %v1664, 1.442695
    %v1692 = vpow.pop %v1691
    %v1693 = vmul.f32 %v1665, 1.442695
    %v1694 = vpow.pop %v1693
    %v1695 = vmul.f32 %v1666, 1.442695
    %v1696 = vpow.pop %v1695
    %v1697 = vmul.f32 %v1667, 1.442695
    %v1698 = vpow.pop %v1697
    %v1699 = vmul.f32 %v1668, 1.442695
    %v1700 = vpow.pop %v1699
    %v1701 = vmul.f32 %v1670, 115.0
    %v1702 = vmul.f32 %v1672, 115.0
    %v1703 = vmul.f32 %v1674, 115.0
    %v1704 = vmul.f32 %v1676, 115.0
    %v1705 = vmul.f32 %v1678, 115.0
    %v1706 = vmul.f32 %v1680, 115.0
    %v1707 = vmul.f32 %v1682, 115.0
    %v1708 = vmul.f32 %v1684, 115.0
    %v1709 = vmul.f32 %v1686, 115.0
    %v1710 = vmul.f32 %v1688, 115.0
    %v1711 = vmul.f32 %v1690, 115.0
    %v1712 = vmul.f32 %v1692, 115.0
    %v1713 = vmul.f32 %v1694, 115.0
    %v1714 = vmul.f32 %v1696, 115.0
    %v1715 = vmul.f32 %v1698, 115.0
    %v1716 = vmul.f32 %v1700, 115.0
    %v1717 = vsub.f32 %v1637, %v1701
    %v1718 = vsub.f32 %v1638, %v1702
    %v1719 = vsub.f32 %v1639, %v1703
    %v1720 = vsub.f32 %v1640, %v1704
    %v1721 = vsub.f32 %v1641, %v1705
    %v1722 = vsub.f32 %v1642, %v1706
    %v1723 = vsub.f32 %v1643, %v1707
    %v1724 = vsub.f32 %v1644, %v1708
    %v1725 = vsub.f32 %v1645, %v1709
    %v1726 = vsub.f32 %v1646, %v1710
    %v1727 = vsub.f32 %v1647, %v1711
    %v1728 = vsub.f32 %v1648, %v1712
    %v1729 = vsub.f32 %v1649, %v1713
    %v1730 = vsub.f32 %v1650, %v1714
    %v1731 = vsub.f32 %v1651, %v1715
    %v1732 = vsub.f32 %v1652, %v1716
    %v1733 = vld [vmem:[#allocation4] sm:$0xff]
    %v1734 = vld [vmem:[#allocation4 + $0x8] sm:$0xff]
    %v1735 = vld [vmem:[#allocation4 + $0x10] sm:$0xff]
    %v1736 = vld [vmem:[#allocation4 + $0x18] sm:$0xff]
    %v1737 = vld [vmem:[#allocation4 + $0x20] sm:$0xff]
    %v1738 = vld [vmem:[#allocation4 + $0x28] sm:$0xff]
    %v1739 = vld [vmem:[#allocation4 + $0x30] sm:$0xff]
    %v1740 = vld [vmem:[#allocation4 + $0x38] sm:$0xff]
    %v1741 = vld [vmem:[#allocation4 + $0x40] sm:$0xff]
    %v1742 = vld [vmem:[#allocation4 + $0x48] sm:$0xff]
    %v1743 = vld [vmem:[#allocation4 + $0x50] sm:$0xff]
    %v1744 = vld [vmem:[#allocation4 + $0x58] sm:$0xff]
    %v1745 = vld [vmem:[#allocation4 + $0x60] sm:$0xff]
    %v1746 = vld [vmem:[#allocation4 + $0x68] sm:$0xff]
    %v1747 = vld [vmem:[#allocation4 + $0x70] sm:$0xff]
    %v1748 = vld [vmem:[#allocation4 + $0x78] sm:$0xff]
    %v1749 = vld [vmem:[#allocation5] sm:$0xff]
    %v1750 = vld [vmem:[#allocation5 + $0x8] sm:$0xff]
    %v1751 = vld [vmem:[#allocation5 + $0x10] sm:$0xff]
    %v1752 = vld [vmem:[#allocation5 + $0x18] sm:$0xff]
    %v1753 = vld [vmem:[#allocation5 + $0x20] sm:$0xff]
    %v1754 = vld [vmem:[#allocation5 + $0x28] sm:$0xff]
    %v1755 = vld [vmem:[#allocation5 + $0x30] sm:$0xff]
    %v1756 = vld [vmem:[#allocation5 + $0x38] sm:$0xff]
    %v1757 = vld [vmem:[#allocation5 + $0x40] sm:$0xff]
    %v1758 = vld [vmem:[#allocation5 + $0x48] sm:$0xff]
    %v1759 = vld [vmem:[#allocation5 + $0x50] sm:$0xff]
    %v1760 = vld [vmem:[#allocation5 + $0x58] sm:$0xff]
    %v1761 = vld [vmem:[#allocation5 + $0x60] sm:$0xff]
    %v1762 = vld [vmem:[#allocation5 + $0x68] sm:$0xff]
    %v1763 = vld [vmem:[#allocation5 + $0x70] sm:$0xff]
    %v1764 = vld [vmem:[#allocation5 + $0x78] sm:$0xff]
    %v1765 = vlog2.pop %v1717
    %v1766 = vmul.f32 %v1765, 0.6931472
    %v1767 = vlog2.pop %v1718
    %v1768 = vmul.f32 %v1767, 0.6931472
    %v1769 = vlog2.pop %v1719
    %v1770 = vmul.f32 %v1769, 0.6931472
    %v1771 = vlog2.pop %v1720
    %v1772 = vmul.f32 %v1771, 0.6931472
    %v1773 = vlog2.pop %v1721
    %v1774 = vmul.f32 %v1773, 0.6931472
    %v1775 = vlog2.pop %v1722
    %v1776 = vmul.f32 %v1775, 0.6931472
    %v1777 = vlog2.pop %v1723
    %v1778 = vmul.f32 %v1777, 0.6931472
    %v1779 = vlog2.pop %v1724
    %v1780 = vmul.f32 %v1779, 0.6931472
    %v1781 = vlog2.pop %v1725
    %v1782 = vmul.f32 %v1781, 0.6931472
    %v1783 = vlog2.pop %v1726
    %v1784 = vmul.f32 %v1783, 0.6931472
    %v1785 = vlog2.pop %v1727
    %v1786 = vmul.f32 %v1785, 0.6931472
    %v1787 = vlog2.pop %v1728
    %v1788 = vmul.f32 %v1787, 0.6931472
    %v1789 = vlog2.pop %v1729
    %v1790 = vmul.f32 %v1789, 0.6931472
    %v1791 = vlog2.pop %v1730
    %v1792 = vmul.f32 %v1791, 0.6931472
    %v1793 = vlog2.pop %v1731
    %v1794 = vmul.f32 %v1793, 0.6931472
    %v1795 = vlog2.pop %v1732
    %v1796 = vmul.f32 %v1795, 0.6931472
    %v1797 = vadd.f32 %v1621, %v1766
    %v1798 = vadd.f32 %v1622, %v1768
    %v1799 = vadd.f32 %v1623, %v1770
    %v1800 = vadd.f32 %v1624, %v1772
    %v1801 = vadd.f32 %v1625, %v1774
    %v1802 = vadd.f32 %v1626, %v1776
    %v1803 = vadd.f32 %v1627, %v1778
    %v1804 = vadd.f32 %v1628, %v1780
    %v1805 = vadd.f32 %v1629, %v1782
    %v1806 = vadd.f32 %v1630, %v1784
    %v1807 = vadd.f32 %v1631, %v1786
    %v1808 = vadd.f32 %v1632, %v1788
    %v1809 = vadd.f32 %v1633, %v1790
    %v1810 = vadd.f32 %v1634, %v1792
    %v1811 = vadd.f32 %v1635, %v1794
    %v1812 = vadd.f32 %v1636, %v1796
    %v1813 = vmul.f32 %v1749, %v1797
    %v1814 = vmul.f32 %v1750, %v1798
    %v1815 = vmul.f32 %v1751, %v1799
    %v1816 = vmul.f32 %v1752, %v1800
    %v1817 = vmul.f32 %v1753, %v1801
    %v1818 = vmul.f32 %v1754, %v1802
    %v1819 = vmul.f32 %v1755, %v1803
    %v1820 = vmul.f32 %v1756, %v1804
    %v1821 = vmul.f32 %v1757, %v1805
    %v1822 = vmul.f32 %v1758, %v1806
    %v1823 = vmul.f32 %v1759, %v1807
    %v1824 = vmul.f32 %v1760, %v1808
    %v1825 = vmul.f32 %v1761, %v1809
    %v1826 = vmul.f32 %v1762, %v1810
    %v1827 = vmul.f32 %v1763, %v1811
    %v1828 = vmul.f32 %v1764, %v1812
    %v1829 = vsub.f32 %v1733, %v1813
    %v1830 = vsub.f32 %v1734, %v1814
    %v1831 = vsub.f32 %v1735, %v1815
    %v1832 = vsub.f32 %v1736, %v1816
    %v1833 = vsub.f32 %v1737, %v1817
    %v1834 = vsub.f32 %v1738, %v1818
    %v1835 = vsub.f32 %v1739, %v1819
    %v1836 = vsub.f32 %v1740, %v1820
    %v1837 = vsub.f32 %v1741, %v1821
    %v1838 = vsub.f32 %v1742, %v1822
    %v1839 = vsub.f32 %v1743, %v1823
    %v1840 = vsub.f32 %v1744, %v1824
    %v1841 = vsub.f32 %v1745, %v1825
    %v1842 = vsub.f32 %v1746, %v1826
    %v1843 = vsub.f32 %v1747, %v1827
    %v1844 = vsub.f32 %v1748, %v1828
    %v1845 = vrcp.pop %v1749
    %v1846 = vmul.f32 %v1829, %v1845
    %v1847 = vrcp.pop %v1750
    %v1848 = vmul.f32 %v1830, %v1847
    %v1849 = vrcp.pop %v1751
    %v1850 = vmul.f32 %v1831, %v1849
    %v1851 = vrcp.pop %v1752
    %v1852 = vmul.f32 %v1832, %v1851
    %v1853 = vrcp.pop %v1753
    %v1854 = vmul.f32 %v1833, %v1853
    %v1855 = vrcp.pop %v1754
    %v1856 = vmul.f32 %v1834, %v1855
    %v1857 = vrcp.pop %v1755
    %v1858 = vmul.f32 %v1835, %v1857
    %v1859 = vrcp.pop %v1756
    %v1860 = vmul.f32 %v1836, %v1859
    %v1861 = vrcp.pop %v1757
    %v1862 = vmul.f32 %v1837, %v1861
    %v1863 = vrcp.pop %v1758
    %v1864 = vmul.f32 %v1838, %v1863
    %v1865 = vrcp.pop %v1759
    %v1866 = vmul.f32 %v1839, %v1865
    %v1867 = vrcp.pop %v1760
    %v1868 = vmul.f32 %v1840, %v1867
    %v1869 = vrcp.pop %v1761
    %v1870 = vmul.f32 %v1841, %v1869
    %v1871 = vrcp.pop %v1762
    %v1872 = vmul.f32 %v1842, %v1871
    %v1873 = vrcp.pop %v1763
    %v1874 = vmul.f32 %v1843, %v1873
    %v1875 = vrcp.pop %v1764
    %v1876 = vmul.f32 %v1844, %v1875
    %v1877 = vlaneseq
    %v1878 = vshrl.u32 %v1877, 7
    %v1879 = vadd.s32 %v1878, 8
    %v1880 = vadd.s32 %v1878, 16
    %v1881 = vadd.s32 %v1878, 24
    %v1882 = vadd.s32 %v1878, 32
    %v1883 = vadd.s32 %v1878, 40
    %v1884 = vadd.s32 %v1878, 48
    %v1885 = vadd.s32 %v1878, 56
    %v1886 = vadd.s32 %v1878, 64
    %v1887 = vadd.s32 %v1878, 72
    %v1888 = vadd.s32 %v1878, 80
    %v1889 = vadd.s32 %v1878, 88
    %v1890 = vadd.s32 %v1878, 96
    %v1891 = vadd.s32 %v1878, 104
    %v1892 = vadd.s32 %v1878, 112
    %v1893 = vadd.s32 %v1878, 120
    %v1894 = vstv %s397
    %v1895 = vadd.s32 %v1894, %v1878
    %v1896 = vadd.s32 %v1894, %v1879
    %v1897 = vadd.s32 %v1894, %v1880
    %v1898 = vadd.s32 %v1894, %v1881
    %v1899 = vadd.s32 %v1894, %v1882
    %v1900 = vadd.s32 %v1894, %v1883
    %v1901 = vadd.s32 %v1894, %v1884
    %v1902 = vadd.s32 %v1894, %v1885
    %v1903 = vadd.s32 %v1894, %v1886
    %v1904 = vadd.s32 %v1894, %v1887
    %v1905 = vadd.s32 %v1894, %v1888
    %v1906 = vadd.s32 %v1894, %v1889
    %v1907 = vadd.s32 %v1894, %v1890
    %v1908 = vadd.s32 %v1894, %v1891
    %v1909 = vadd.s32 %v1894, %v1892
    %v1910 = vadd.s32 %v1894, %v1893
    %vm1911 = vcmp.lt.s32.totalorder %v1895, 8
    %vm1912 = vcmp.lt.s32.totalorder %v1896, 8
    %vm1913 = vcmp.lt.s32.totalorder %v1897, 8
    %vm1914 = vcmp.lt.s32.totalorder %v1898, 8
    %vm1915 = vcmp.lt.s32.totalorder %v1899, 8
    %vm1916 = vcmp.lt.s32.totalorder %v1900, 8
    %vm1917 = vcmp.lt.s32.totalorder %v1901, 8
    %vm1918 = vcmp.lt.s32.totalorder %v1902, 8
    %vm1919 = vcmp.lt.s32.totalorder %v1903, 8
    %vm1920 = vcmp.lt.s32.totalorder %v1904, 8
    %vm1921 = vcmp.lt.s32.totalorder %v1905, 8
    %vm1922 = vcmp.lt.s32.totalorder %v1906, 8
    %vm1923 = vcmp.lt.s32.totalorder %v1907, 8
    %vm1924 = vcmp.lt.s32.totalorder %v1908, 8
    %vm1925 = vcmp.lt.s32.totalorder %v1909, 8
    %vm1926 = vcmp.lt.s32.totalorder %v1910, 8
    %v1927 = vsel %vm1911, %v1846, 0.0
    %v1928 = vsel %vm1912, %v1848, 0.0
    %v1929 = vsel %vm1913, %v1850, 0.0
    %v1930 = vsel %vm1914, %v1852, 0.0
    %v1931 = vsel %vm1915, %v1854, 0.0
    %v1932 = vsel %vm1916, %v1856, 0.0
    %v1933 = vsel %vm1917, %v1858, 0.0
    %v1934 = vsel %vm1918, %v1860, 0.0
    %v1935 = vsel %vm1919, %v1862, 0.0
    %v1936 = vsel %vm1920, %v1864, 0.0
    %v1937 = vsel %vm1921, %v1866, 0.0
    %v1938 = vsel %vm1922, %v1868, 0.0
    %v1939 = vsel %vm1923, %v1870, 0.0
    %v1940 = vsel %vm1924, %v1872, 0.0
    %v1941 = vsel %vm1925, %v1874, 0.0
    %v1942 = vsel %vm1926, %v1876, 0.0
    %vm1943 = vcmask 7168
    %1944 = vst.msk [vmem:[%s4] sm:$0xff] %vm1943, %v1927
    %1945 = vst.msk [vmem:[%s4 + $0x8] sm:$0xff] %vm1943, %v1928
    %1946 = vst.msk [vmem:[%s4 + $0x10] sm:$0xff] %vm1943, %v1929
    %1947 = vst.msk [vmem:[%s4 + $0x18] sm:$0xff] %vm1943, %v1930
    %1948 = vst.msk [vmem:[%s4 + $0x20] sm:$0xff] %vm1943, %v1931
    %1949 = vst.msk [vmem:[%s4 + $0x28] sm:$0xff] %vm1943, %v1932
    %1950 = vst.msk [vmem:[%s4 + $0x30] sm:$0xff] %vm1943, %v1933
    %1951 = vst.msk [vmem:[%s4 + $0x38] sm:$0xff] %vm1943, %v1934
    %1952 = vst.msk [vmem:[%s4 + $0x40] sm:$0xff] %vm1943, %v1935
    %1953 = vst.msk [vmem:[%s4 + $0x48] sm:$0xff] %vm1943, %v1936
    %1954 = vst.msk [vmem:[%s4 + $0x50] sm:$0xff] %vm1943, %v1937
    %1955 = vst.msk [vmem:[%s4 + $0x58] sm:$0xff] %vm1943, %v1938
    %1956 = vst.msk [vmem:[%s4 + $0x60] sm:$0xff] %vm1943, %v1939
    %1957 = vst.msk [vmem:[%s4 + $0x68] sm:$0xff] %vm1943, %v1940
    %1958 = vst.msk [vmem:[%s4 + $0x70] sm:$0xff] %vm1943, %v1941
    %1959 = vst.msk [vmem:[%s4 + $0x78] sm:$0xff] %vm1943, %v1942
  $region33: #{tpu_custom_call.1} parent=0 // pred_fallthru
    _
  // Predicated region
  $region34: #{tpu_custom_call.1} parent=0 // pred_check
    _
  $region35: #{tpu_custom_call.1} parent=0 // pred_check_branch
    %1961 = sbr.rel (0) target = $region37
  $region36: #{tpu_custom_call.1} parent=0 // pred_region
    _
  $region37: #{tpu_custom_call.1} parent=0 // pred_fallthru
    _
  // Predicated region
  $region38: #{tpu_custom_call.1} parent=0 // pred_check
    _
  $region39: #{tpu_custom_call.1} parent=0 // pred_check_branch
    %1963 = sbr.rel (0) target = $region41
  $region40: #{tpu_custom_call.1} parent=0 // pred_region
    _
  $region41: #{tpu_custom_call.1} parent=0 // pred_fallthru
    _

</llo_original>
